<compile_context>
chip_gen: v7x
topology: tpu7x:2x2x1
jax: 0.10.0
libtpu: 0.0.40
codegen_flags: <defaults>
</compile_context>

<pallas_src>
import functools
import math

import jax
import jax.numpy as jnp
from jax.experimental import pallas as pl
from jax.experimental.pallas import tpu as pltpu

# ---------------------------------------------------------------------------
# Architecture constants (fixed by the PyTorch module).
# ---------------------------------------------------------------------------
ENC_H1 = 264          # encoder hidden1 (nb_hidden=1 branch)
ENC_HOUT = 64         # encoder hidden_out_dim
DEC_HIN = 64          # decoder hidden_in_dim
DEC_H1 = 256          # decoder hidden1 (complex)
DEC_H2 = 512          # decoder hidden2 (complex)
NEG_SLOPE = 0.2       # LeakyReLU negative slope

LANE = 128            # TPU lane width (last-dim alignment)


def _round_up(n, m):
    return ((n + m - 1) // m) * m


def _leaky_relu(x):
    return jnp.where(x > 0, x, NEG_SLOPE * x)


def _linear(h, w_ref, b_ref):
    # h: [TB, in_p] f32, w_ref: [in_p, out_p] (matmul dtype), b_ref: [1, out_p] f32
    w = w_ref[...]
    a = h.astype(w.dtype)                      # activation cast only (cheap)
    return jnp.dot(a, w, preferred_element_type=jnp.float32) + b_ref[...]


def autoencoder_kernel(
    x_ref,
    # encoder params
    ew1, eb1, ew2, eb2, ew3, eb3,
    # decoder params
    dw1, db1, dw2, db2, dw3, db3, dw4, db4,
    # output
    o_ref,
):
    h = x_ref[...].astype(jnp.float32)

    # ---- Encoder ----
    h = _leaky_relu(_linear(h, ew1, eb1))   # in_p   -> 384
    h = _leaky_relu(_linear(h, ew2, eb2))   # 384    -> 128
    h = jnp.tanh(_linear(h, ew3, eb3))      # 128    -> lat_p

    # ---- Decoder ----
    h = _leaky_relu(_linear(h, dw1, db1))   # lat_p  -> 128
    h = _leaky_relu(_linear(h, dw2, db2))   # 128    -> 256
    h = _leaky_relu(_linear(h, dw3, db3))   # 256    -> 512
    h = _leaky_relu(_linear(h, dw4, db4))   # 512    -> out_p

    o_ref[...] = h.astype(o_ref.dtype)


def _pad2(a, rows, cols):
    return jnp.pad(a, ((0, rows - a.shape[0]), (0, cols - a.shape[1])))


@functools.partial(jax.jit, static_argnames=("tile_b", "matmul_dtype"))
def autoencoder_forward(x, params, *, tile_b=512, matmul_dtype=jnp.bfloat16):
    """x: [B, input_dim] float32 -> [B, output_dim] float32."""
    batch, in_dim = x.shape
    latent_dim = params["enc_w3"].shape[1]
    out_dim = params["dec_w4"].shape[1]

    # Padded (lane-dense) feature dims — multiples of 128.
    in_p = _round_up(in_dim, LANE)
    e1_p = _round_up(ENC_H1, LANE)
    eo_p = _round_up(ENC_HOUT, LANE)
    lat_p = _round_up(latent_dim, LANE)
    d0_p = _round_up(DEC_HIN, LANE)
    d1_p = _round_up(DEC_H1, LANE)
    d2_p = _round_up(DEC_H2, LANE)
    out_p = _round_up(out_dim, LANE)

    # Batch tile: balance tiles across grid steps (minimizes last-tile zero
    # padding for awkward batch sizes) and round to 16 rows for sub-32-bit
    # matmul operands (bf16 packs 2 rows/sublane), 8 rows for f32.
    gran = 16 if jnp.dtype(matmul_dtype).itemsize < 4 else 8
    n_tiles = max(1, math.ceil(batch / tile_b))
    tb = _round_up(math.ceil(batch / n_tiles), gran)
    b_pad = _round_up(batch, tb)

    xp = jnp.pad(x.astype(jnp.float32),
                 ((0, b_pad - batch), (0, in_p - in_dim)))

    # Zero-pad all weights / biases to the padded dims.  Zeros propagate
    # exactly through the matmul chain and the activations (f(0)=0).
    # Weights are pre-cast to the matmul dtype HERE (halves weight DMA and
    # removes the per-step in-kernel cast); biases stay f32 (added on the
    # f32 accumulator).
    wdims = [
        ("enc_w1", "enc_b1", in_p, e1_p),
        ("enc_w2", "enc_b2", e1_p, eo_p),
        ("enc_w3", "enc_b3", eo_p, lat_p),
        ("dec_w1", "dec_b1", lat_p, d0_p),
        ("dec_w2", "dec_b2", d0_p, d1_p),
        ("dec_w3", "dec_b3", d1_p, d2_p),
        ("dec_w4", "dec_b4", d2_p, out_p),
    ]
    flat = []
    for wname, bname, dpi, dpo in wdims:
        flat.append(_pad2(params[wname].astype(jnp.float32),
                          dpi, dpo).astype(matmul_dtype))
        flat.append(_pad2(params[bname].astype(jnp.float32), 1, dpo))

    grid = (b_pad // tb,)

    x_spec = pl.BlockSpec((tb, in_p), lambda i: (i, 0))
    # Constant index_map + single-buffering -> weights fetched once, stay
    # resident in VMEM across grid steps with no double-buffer copy.
    w_specs = [
        pl.BlockSpec(p.shape, lambda i: (0, 0), pipeline_mode=pl.Buffered(1))
        for p in flat
    ]
    o_spec = pl.BlockSpec((tb, out_p), lambda i: (i, 0))

    out_padded = pl.pallas_call(
        autoencoder_kernel,
        out_shape=jax.ShapeDtypeStruct((b_pad, out_p), jnp.float32),
        grid=grid,
        in_specs=[x_spec] + w_specs,
        out_specs=o_spec,
        compiler_params=pltpu.CompilerParams(
            dimension_semantics=("parallel",),
        ),
    )(xp, *flat)

    return out_padded[:batch, :out_dim]


def init_params(key, input_dim, latent_dim, output_dim):
    """Deterministic parameter init (PyTorch-like uniform bounds)."""
    dims = [
        # (in, out) per linear layer, in forward order
        ("enc_w1", "enc_b1", input_dim, ENC_H1),
        ("enc_w2", "enc_b2", ENC_H1, ENC_HOUT),
        ("enc_w3", "enc_b3", ENC_HOUT, latent_dim),
        ("dec_w1", "dec_b1", latent_dim, DEC_HIN),
        ("dec_w2", "dec_b2", DEC_HIN, DEC_H1),
        ("dec_w3", "dec_b3", DEC_H1, DEC_H2),
        ("dec_w4", "dec_b4", DEC_H2, output_dim),
    ]
    params = {}
    keys = jax.random.split(key, 2 * len(dims))
    for i, (wname, bname, d_in, d_out) in enumerate(dims):
        bound = 1.0 / jnp.sqrt(d_in)
        params[wname] = jax.random.uniform(
            keys[2 * i], (d_in, d_out), jnp.float32, -bound, bound)
        # biases stored as (1, out) for clean broadcasting on TPU lanes
        params[bname] = jax.random.uniform(
            keys[2 * i + 1], (1, d_out), jnp.float32, -bound, bound)
    return params


def reference_forward(x, params):
    """Pure-JAX reference (highest-precision matmuls) for correctness check."""
    hp = jax.lax.Precision.HIGHEST

    def lin(h, w, b):
        return jnp.dot(h, w, precision=hp,
                       preferred_element_type=jnp.float32) + b

    h = x
    h = _leaky_relu(lin(h, params["enc_w1"], params["enc_b1"]))
    h = _leaky_relu(lin(h, params["enc_w2"], params["enc_b2"]))
    h = jnp.tanh(lin(h, params["enc_w3"], params["enc_b3"]))
    h = _leaky_relu(lin(h, params["dec_w1"], params["dec_b1"]))
    h = _leaky_relu(lin(h, params["dec_w2"], params["dec_b2"]))
    h = _leaky_relu(lin(h, params["dec_w3"], params["dec_b3"]))
    h = _leaky_relu(lin(h, params["dec_w4"], params["dec_b4"]))
    return h


if __name__ == "__main__":
    # Small problem sizes consistent with the module:
    #   input_dim = chemical species + physical params, latent_dim small,
    #   output_dim = chemical species.
    batch, input_dim, latent_dim, output_dim = 8, 32, 8, 30

    key = jax.random.PRNGKey(0)
    pkey, xkey = jax.random.split(key)
    params = init_params(pkey, input_dim, latent_dim, output_dim)
    x = jax.random.normal(xkey, (batch, input_dim), jnp.float32)

    ref = reference_forward(x, params)

    # Default fast path: bf16 MXU operands, f32 accumulation.
    out_bf16 = jax.block_until_ready(autoencoder_forward(x, params))
    assert out_bf16.shape == (batch, output_dim)
    assert jnp.allclose(out_bf16, ref, atol=2e-2, rtol=2e-2), \
        "bf16 kernel mismatch vs reference"

    # Exact path: f32 operands, tight tolerance.
    out_f32 = jax.block_until_ready(
        autoencoder_forward(x, params, matmul_dtype=jnp.float32))
    assert out_f32.shape == (batch, output_dim)
    assert jnp.allclose(out_f32, ref, atol=1e-4, rtol=1e-4), \
        "f32 kernel mismatch vs reference"

    print("KERNEL_OK")
</pallas_src>

<mosaic_0001>
module attributes {stable_mosaic.version = 11 : i64} {
  func.func @autoencoder_kernel(%arg0: i32, %arg1: memref<16x128xf32, #tpu.memory_space<vmem>>, %arg2: memref<128x384xbf16, #tpu.memory_space<vmem>>, %arg3: memref<1x384xf32, #tpu.memory_space<vmem>>, %arg4: memref<384x128xbf16, #tpu.memory_space<vmem>>, %arg5: memref<1x128xf32, #tpu.memory_space<vmem>>, %arg6: memref<128x128xbf16, #tpu.memory_space<vmem>>, %arg7: memref<1x128xf32, #tpu.memory_space<vmem>>, %arg8: memref<128x128xbf16, #tpu.memory_space<vmem>>, %arg9: memref<1x128xf32, #tpu.memory_space<vmem>>, %arg10: memref<128x256xbf16, #tpu.memory_space<vmem>>, %arg11: memref<1x256xf32, #tpu.memory_space<vmem>>, %arg12: memref<256x512xbf16, #tpu.memory_space<vmem>>, %arg13: memref<1x512xf32, #tpu.memory_space<vmem>>, %arg14: memref<512x128xbf16, #tpu.memory_space<vmem>>, %arg15: memref<1x128xf32, #tpu.memory_space<vmem>>, %arg16: memref<16x128xf32, #tpu.memory_space<vmem>>) attributes {dimension_semantics = [#tpu.dimension_semantics<parallel>], iteration_bounds = array<i64: 1>, scalar_prefetch = 0 : i64, scratch_operands = 0 : i64, tpu.core_type = #tpu.core_type<tc>, window_params = [{transform_indices = @transform_0, window_bounds = array<i64: 16, 128>}, {pipeline_mode = #tpu.pipeline_mode<synchronous>, transform_indices = @transform_1, window_bounds = array<i64: 128, 384>}, {pipeline_mode = #tpu.pipeline_mode<synchronous>, transform_indices = @transform_2, window_bounds = array<i64: 1, 384>}, {pipeline_mode = #tpu.pipeline_mode<synchronous>, transform_indices = @transform_3, window_bounds = array<i64: 384, 128>}, {pipeline_mode = #tpu.pipeline_mode<synchronous>, transform_indices = @transform_4, window_bounds = array<i64: 1, 128>}, {pipeline_mode = #tpu.pipeline_mode<synchronous>, transform_indices = @transform_5, window_bounds = array<i64: 128, 128>}, {pipeline_mode = #tpu.pipeline_mode<synchronous>, transform_indices = @transform_6, window_bounds = array<i64: 1, 128>}, {pipeline_mode = #tpu.pipeline_mode<synchronous>, transform_indices = @transform_7, window_bounds = array<i64: 128, 128>}, {pipeline_mode = #tpu.pipeline_mode<synchronous>, transform_indices = @transform_8, window_bounds = array<i64: 1, 128>}, {pipeline_mode = #tpu.pipeline_mode<synchronous>, transform_indices = @transform_9, window_bounds = array<i64: 128, 256>}, {pipeline_mode = #tpu.pipeline_mode<synchronous>, transform_indices = @transform_10, window_bounds = array<i64: 1, 256>}, {pipeline_mode = #tpu.pipeline_mode<synchronous>, transform_indices = @transform_11, window_bounds = array<i64: 256, 512>}, {pipeline_mode = #tpu.pipeline_mode<synchronous>, transform_indices = @transform_12, window_bounds = array<i64: 1, 512>}, {pipeline_mode = #tpu.pipeline_mode<synchronous>, transform_indices = @transform_13, window_bounds = array<i64: 512, 128>}, {pipeline_mode = #tpu.pipeline_mode<synchronous>, transform_indices = @transform_14, window_bounds = array<i64: 1, 128>}, {transform_indices = @transform_15, window_bounds = array<i64: 16, 128>}]} {
    %c0 = arith.constant 0 : index
    %c0_0 = arith.constant 0 : index
    %0 = vector.load %arg1[%c0, %c0_0] : memref<16x128xf32, #tpu.memory_space<vmem>>, vector<16x128xf32>
    %c0_1 = arith.constant 0 : index
    %c0_2 = arith.constant 0 : index
    %1 = vector.load %arg2[%c0_1, %c0_2] : memref<128x384xbf16, #tpu.memory_space<vmem>>, vector<128x384xbf16>
    %2 = arith.truncf %0 : vector<16x128xf32> to vector<16x128xbf16>
    %cst = arith.constant dense<0.000000e+00> : vector<16x384xf32>
    %3 = tpu.matmul %2, %1, %cst {dimension_numbers = #tpu.dot_dimension_numbers<[1], [0], [0], [1], [0, 0, 1, 1], [], []>} : vector<16x128xbf16>, vector<128x384xbf16>, vector<16x384xf32> -> vector<16x384xf32>
    %c0_3 = arith.constant 0 : index
    %c0_4 = arith.constant 0 : index
    %4 = vector.load %arg3[%c0_3, %c0_4] : memref<1x384xf32, #tpu.memory_space<vmem>>, vector<1x384xf32>
    %5 = vector.broadcast %4 : vector<1x384xf32> to vector<16x384xf32>
    %6 = arith.addf %3, %5 : vector<16x384xf32>
    %cst_5 = arith.constant 0.000000e+00 : f32
    %7 = vector.broadcast %cst_5 : f32 to vector<16x384xf32>
    %8 = arith.cmpf ogt, %6, %7 : vector<16x384xf32>
    %cst_6 = arith.constant 2.000000e-01 : f32
    %9 = vector.broadcast %cst_6 : f32 to vector<16x384xf32>
    %10 = arith.mulf %9, %6 : vector<16x384xf32>
    %11 = arith.select %8, %6, %10 : vector<16x384xi1>, vector<16x384xf32>
    %c0_7 = arith.constant 0 : index
    %c0_8 = arith.constant 0 : index
    %12 = vector.load %arg4[%c0_7, %c0_8] : memref<384x128xbf16, #tpu.memory_space<vmem>>, vector<384x128xbf16>
    %13 = arith.truncf %11 : vector<16x384xf32> to vector<16x384xbf16>
    %cst_9 = arith.constant dense<0.000000e+00> : vector<16x128xf32>
    %14 = tpu.matmul %13, %12, %cst_9 {dimension_numbers = #tpu.dot_dimension_numbers<[1], [0], [0], [1], [0, 0, 1, 1], [], []>} : vector<16x384xbf16>, vector<384x128xbf16>, vector<16x128xf32> -> vector<16x128xf32>
    %c0_10 = arith.constant 0 : index
    %c0_11 = arith.constant 0 : index
    %15 = vector.load %arg5[%c0_10, %c0_11] : memref<1x128xf32, #tpu.memory_space<vmem>>, vector<1x128xf32>
    %16 = vector.broadcast %15 : vector<1x128xf32> to vector<16x128xf32>
    %17 = arith.addf %14, %16 : vector<16x128xf32>
    %cst_12 = arith.constant 0.000000e+00 : f32
    %18 = vector.broadcast %cst_12 : f32 to vector<16x128xf32>
    %19 = arith.cmpf ogt, %17, %18 : vector<16x128xf32>
    %cst_13 = arith.constant 2.000000e-01 : f32
    %20 = vector.broadcast %cst_13 : f32 to vector<16x128xf32>
    %21 = arith.mulf %20, %17 : vector<16x128xf32>
    %22 = arith.select %19, %17, %21 : vector<16x128xi1>, vector<16x128xf32>
    %c0_14 = arith.constant 0 : index
    %c0_15 = arith.constant 0 : index
    %23 = vector.load %arg6[%c0_14, %c0_15] : memref<128x128xbf16, #tpu.memory_space<vmem>>, vector<128x128xbf16>
    %24 = arith.truncf %22 : vector<16x128xf32> to vector<16x128xbf16>
    %cst_16 = arith.constant dense<0.000000e+00> : vector<16x128xf32>
    %25 = tpu.matmul %24, %23, %cst_16 {dimension_numbers = #tpu.dot_dimension_numbers<[1], [0], [0], [1], [0, 0, 1, 1], [], []>} : vector<16x128xbf16>, vector<128x128xbf16>, vector<16x128xf32> -> vector<16x128xf32>
    %c0_17 = arith.constant 0 : index
    %c0_18 = arith.constant 0 : index
    %26 = vector.load %arg7[%c0_17, %c0_18] : memref<1x128xf32, #tpu.memory_space<vmem>>, vector<1x128xf32>
    %27 = vector.broadcast %26 : vector<1x128xf32> to vector<16x128xf32>
    %28 = arith.addf %25, %27 : vector<16x128xf32>
    %29 = math.tanh %28 : vector<16x128xf32>
    %c0_19 = arith.constant 0 : index
    %c0_20 = arith.constant 0 : index
    %30 = vector.load %arg8[%c0_19, %c0_20] : memref<128x128xbf16, #tpu.memory_space<vmem>>, vector<128x128xbf16>
    %31 = arith.truncf %29 : vector<16x128xf32> to vector<16x128xbf16>
    %cst_21 = arith.constant dense<0.000000e+00> : vector<16x128xf32>
    %32 = tpu.matmul %31, %30, %cst_21 {dimension_numbers = #tpu.dot_dimension_numbers<[1], [0], [0], [1], [0, 0, 1, 1], [], []>} : vector<16x128xbf16>, vector<128x128xbf16>, vector<16x128xf32> -> vector<16x128xf32>
    %c0_22 = arith.constant 0 : index
    %c0_23 = arith.constant 0 : index
    %33 = vector.load %arg9[%c0_22, %c0_23] : memref<1x128xf32, #tpu.memory_space<vmem>>, vector<1x128xf32>
    %34 = vector.broadcast %33 : vector<1x128xf32> to vector<16x128xf32>
    %35 = arith.addf %32, %34 : vector<16x128xf32>
    %cst_24 = arith.constant 0.000000e+00 : f32
    %36 = vector.broadcast %cst_24 : f32 to vector<16x128xf32>
    %37 = arith.cmpf ogt, %35, %36 : vector<16x128xf32>
    %cst_25 = arith.constant 2.000000e-01 : f32
    %38 = vector.broadcast %cst_25 : f32 to vector<16x128xf32>
    %39 = arith.mulf %38, %35 : vector<16x128xf32>
    %40 = arith.select %37, %35, %39 : vector<16x128xi1>, vector<16x128xf32>
    %c0_26 = arith.constant 0 : index
    %c0_27 = arith.constant 0 : index
    %41 = vector.load %arg10[%c0_26, %c0_27] : memref<128x256xbf16, #tpu.memory_space<vmem>>, vector<128x256xbf16>
    %42 = arith.truncf %40 : vector<16x128xf32> to vector<16x128xbf16>
    %cst_28 = arith.constant dense<0.000000e+00> : vector<16x256xf32>
    %43 = tpu.matmul %42, %41, %cst_28 {dimension_numbers = #tpu.dot_dimension_numbers<[1], [0], [0], [1], [0, 0, 1, 1], [], []>} : vector<16x128xbf16>, vector<128x256xbf16>, vector<16x256xf32> -> vector<16x256xf32>
    %c0_29 = arith.constant 0 : index
    %c0_30 = arith.constant 0 : index
    %44 = vector.load %arg11[%c0_29, %c0_30] : memref<1x256xf32, #tpu.memory_space<vmem>>, vector<1x256xf32>
    %45 = vector.broadcast %44 : vector<1x256xf32> to vector<16x256xf32>
    %46 = arith.addf %43, %45 : vector<16x256xf32>
    %cst_31 = arith.constant 0.000000e+00 : f32
    %47 = vector.broadcast %cst_31 : f32 to vector<16x256xf32>
    %48 = arith.cmpf ogt, %46, %47 : vector<16x256xf32>
    %cst_32 = arith.constant 2.000000e-01 : f32
    %49 = vector.broadcast %cst_32 : f32 to vector<16x256xf32>
    %50 = arith.mulf %49, %46 : vector<16x256xf32>
    %51 = arith.select %48, %46, %50 : vector<16x256xi1>, vector<16x256xf32>
    %c0_33 = arith.constant 0 : index
    %c0_34 = arith.constant 0 : index
    %52 = vector.load %arg12[%c0_33, %c0_34] : memref<256x512xbf16, #tpu.memory_space<vmem>>, vector<256x512xbf16>
    %53 = arith.truncf %51 : vector<16x256xf32> to vector<16x256xbf16>
    %cst_35 = arith.constant dense<0.000000e+00> : vector<16x512xf32>
    %54 = tpu.matmul %53, %52, %cst_35 {dimension_numbers = #tpu.dot_dimension_numbers<[1], [0], [0], [1], [0, 0, 1, 1], [], []>} : vector<16x256xbf16>, vector<256x512xbf16>, vector<16x512xf32> -> vector<16x512xf32>
    %c0_36 = arith.constant 0 : index
    %c0_37 = arith.constant 0 : index
    %55 = vector.load %arg13[%c0_36, %c0_37] : memref<1x512xf32, #tpu.memory_space<vmem>>, vector<1x512xf32>
    %56 = vector.broadcast %55 : vector<1x512xf32> to vector<16x512xf32>
    %57 = arith.addf %54, %56 : vector<16x512xf32>
    %cst_38 = arith.constant 0.000000e+00 : f32
    %58 = vector.broadcast %cst_38 : f32 to vector<16x512xf32>
    %59 = arith.cmpf ogt, %57, %58 : vector<16x512xf32>
    %cst_39 = arith.constant 2.000000e-01 : f32
    %60 = vector.broadcast %cst_39 : f32 to vector<16x512xf32>
    %61 = arith.mulf %60, %57 : vector<16x512xf32>
    %62 = arith.select %59, %57, %61 : vector<16x512xi1>, vector<16x512xf32>
    %c0_40 = arith.constant 0 : index
    %c0_41 = arith.constant 0 : index
    %63 = vector.load %arg14[%c0_40, %c0_41] : memref<512x128xbf16, #tpu.memory_space<vmem>>, vector<512x128xbf16>
    %64 = arith.truncf %62 : vector<16x512xf32> to vector<16x512xbf16>
    %cst_42 = arith.constant dense<0.000000e+00> : vector<16x128xf32>
    %65 = tpu.matmul %64, %63, %cst_42 {dimension_numbers = #tpu.dot_dimension_numbers<[1], [0], [0], [1], [0, 0, 1, 1], [], []>} : vector<16x512xbf16>, vector<512x128xbf16>, vector<16x128xf32> -> vector<16x128xf32>
    %c0_43 = arith.constant 0 : index
    %c0_44 = arith.constant 0 : index
    %66 = vector.load %arg15[%c0_43, %c0_44] : memref<1x128xf32, #tpu.memory_space<vmem>>, vector<1x128xf32>
    %67 = vector.broadcast %66 : vector<1x128xf32> to vector<16x128xf32>
    %68 = arith.addf %65, %67 : vector<16x128xf32>
    %cst_45 = arith.constant 0.000000e+00 : f32
    %69 = vector.broadcast %cst_45 : f32 to vector<16x128xf32>
    %70 = arith.cmpf ogt, %68, %69 : vector<16x128xf32>
    %cst_46 = arith.constant 2.000000e-01 : f32
    %71 = vector.broadcast %cst_46 : f32 to vector<16x128xf32>
    %72 = arith.mulf %71, %68 : vector<16x128xf32>
    %73 = arith.select %70, %68, %72 : vector<16x128xi1>, vector<16x128xf32>
    %c0_47 = arith.constant 0 : index
    %c0_48 = arith.constant 0 : index
    %74 = vector.load %arg16[%c0_47, %c0_48] : memref<16x128xf32, #tpu.memory_space<vmem>>, vector<16x128xf32>
    tpu.vector_store %arg16[%c0_47, %c0_48], %73 {strides = array<i32>} : memref<16x128xf32, #tpu.memory_space<vmem>>, vector<16x128xf32>,
    return
  }
  func.func @transform_0(%arg0: i32) -> (i32, i32) {
    %c0_i32 = arith.constant 0 : i32
    %c0_i32_0 = arith.constant 0 : i32
    return %arg0, %c0_i32 : i32, i32
  }
  func.func @transform_1(%arg0: i32) -> (i32, i32) {
    %c0_i32 = arith.constant 0 : i32
    %c0_i32_0 = arith.constant 0 : i32
    %c0_i32_1 = arith.constant 0 : i32
    return %c0_i32, %c0_i32_0 : i32, i32
  }
  func.func @transform_2(%arg0: i32) -> (i32, i32) {
    %c0_i32 = arith.constant 0 : i32
    %c0_i32_0 = arith.constant 0 : i32
    %c0_i32_1 = arith.constant 0 : i32
    return %c0_i32, %c0_i32_0 : i32, i32
  }
  func.func @transform_3(%arg0: i32) -> (i32, i32) {
    %c0_i32 = arith.constant 0 : i32
    %c0_i32_0 = arith.constant 0 : i32
    %c0_i32_1 = arith.constant 0 : i32
    return %c0_i32, %c0_i32_0 : i32, i32
  }
  func.func @transform_4(%arg0: i32) -> (i32, i32) {
    %c0_i32 = arith.constant 0 : i32
    %c0_i32_0 = arith.constant 0 : i32
    %c0_i32_1 = arith.constant 0 : i32
    return %c0_i32, %c0_i32_0 : i32, i32
  }
  func.func @transform_5(%arg0: i32) -> (i32, i32) {
    %c0_i32 = arith.constant 0 : i32
    %c0_i32_0 = arith.constant 0 : i32
    %c0_i32_1 = arith.constant 0 : i32
    return %c0_i32, %c0_i32_0 : i32, i32
  }
  func.func @transform_6(%arg0: i32) -> (i32, i32) {
    %c0_i32 = arith.constant 0 : i32
    %c0_i32_0 = arith.constant 0 : i32
    %c0_i32_1 = arith.constant 0 : i32
    return %c0_i32, %c0_i32_0 : i32, i32
  }
  func.func @transform_7(%arg0: i32) -> (i32, i32) {
    %c0_i32 = arith.constant 0 : i32
    %c0_i32_0 = arith.constant 0 : i32
    %c0_i32_1 = arith.constant 0 : i32
    return %c0_i32, %c0_i32_0 : i32, i32
  }
  func.func @transform_8(%arg0: i32) -> (i32, i32) {
    %c0_i32 = arith.constant 0 : i32
    %c0_i32_0 = arith.constant 0 : i32
    %c0_i32_1 = arith.constant 0 : i32
    return %c0_i32, %c0_i32_0 : i32, i32
  }
  func.func @transform_9(%arg0: i32) -> (i32, i32) {
    %c0_i32 = arith.constant 0 : i32
    %c0_i32_0 = arith.constant 0 : i32
    %c0_i32_1 = arith.constant 0 : i32
    return %c0_i32, %c0_i32_0 : i32, i32
  }
  func.func @transform_10(%arg0: i32) -> (i32, i32) {
    %c0_i32 = arith.constant 0 : i32
    %c0_i32_0 = arith.constant 0 : i32
    %c0_i32_1 = arith.constant 0 : i32
    return %c0_i32, %c0_i32_0 : i32, i32
  }
  func.func @transform_11(%arg0: i32) -> (i32, i32) {
    %c0_i32 = arith.constant 0 : i32
    %c0_i32_0 = arith.constant 0 : i32
    %c0_i32_1 = arith.constant 0 : i32
    return %c0_i32, %c0_i32_0 : i32, i32
  }
  func.func @transform_12(%arg0: i32) -> (i32, i32) {
    %c0_i32 = arith.constant 0 : i32
    %c0_i32_0 = arith.constant 0 : i32
    %c0_i32_1 = arith.constant 0 : i32
    return %c0_i32, %c0_i32_0 : i32, i32
  }
  func.func @transform_13(%arg0: i32) -> (i32, i32) {
    %c0_i32 = arith.constant 0 : i32
    %c0_i32_0 = arith.constant 0 : i32
    %c0_i32_1 = arith.constant 0 : i32
    return %c0_i32, %c0_i32_0 : i32, i32
  }
  func.func @transform_14(%arg0: i32) -> (i32, i32) {
    %c0_i32 = arith.constant 0 : i32
    %c0_i32_0 = arith.constant 0 : i32
    %c0_i32_1 = arith.constant 0 : i32
    return %c0_i32, %c0_i32_0 : i32, i32
  }
  func.func @transform_15(%arg0: i32) -> (i32, i32) {
    %c0_i32 = arith.constant 0 : i32
    %c0_i32_0 = arith.constant 0 : i32
    return %arg0, %c0_i32 : i32, i32
  }
}

</mosaic_0001>

<llo_original>
// kernel: autoencoder_forward.1
$region0: #{autoencoder_forward.1}
  #allocation0 [shape = 'u32[]', space=smem, size = 0x4, offset = 0x4, fixed_abs, tag = 'smem constant byte address 0x4 - core index']
  #allocation1 [shape = 'u32[144,128]{1,0:T(1,128)}', space=vmem, size = 0x12000, scoped, tag = 'internal scratch']
  %s0 = inlined_call_operand.vmem [shape: f32[16,128], index: 0, kind: input, shape index: {}]
  %s1 = inlined_call_operand.vmem [shape: bf16[128,384], index: 1, kind: input, shape index: {}]
  %s2 = inlined_call_operand.vmem [shape: f32[1,384], index: 2, kind: input, shape index: {}]
  %s3 = inlined_call_operand.vmem [shape: bf16[384,128], index: 3, kind: input, shape index: {}]
  %s4 = inlined_call_operand.vmem [shape: f32[1,128], index: 4, kind: input, shape index: {}]
  %s5 = inlined_call_operand.vmem [shape: bf16[128,128], index: 5, kind: input, shape index: {}]
  %s6 = inlined_call_operand.vmem [shape: f32[1,128], index: 6, kind: input, shape index: {}]
  %s7 = inlined_call_operand.vmem [shape: bf16[128,128], index: 7, kind: input, shape index: {}]
  %s8 = inlined_call_operand.vmem [shape: f32[1,128], index: 8, kind: input, shape index: {}]
  %s9 = inlined_call_operand.vmem [shape: bf16[128,256], index: 9, kind: input, shape index: {}]
  %s10 = inlined_call_operand.vmem [shape: f32[1,256], index: 10, kind: input, shape index: {}]
  %s11 = inlined_call_operand.vmem [shape: bf16[256,512], index: 11, kind: input, shape index: {}]
  %s12 = inlined_call_operand.vmem [shape: f32[1,512], index: 12, kind: input, shape index: {}]
  %s13 = inlined_call_operand.vmem [shape: bf16[512,128], index: 13, kind: input, shape index: {}]
  %s14 = inlined_call_operand.vmem [shape: f32[1,128], index: 14, kind: input, shape index: {}]
  %s15 = inlined_call_operand.vmem [shape: f32[16,128], index: 15, kind: output, shape index: {}]
  %s16 = sld [smem:[#allocation0]]
  $region70: #{autoencoder_forward.1} parent=0
    _
  %s18 = ssub.s32 1, %s16
  %s19 = scalar_select 0, %s18, %s16
  // Predicated region
  $region2: #{autoencoder_forward.1} parent=0 // pred_check
    _
  $region3: #{autoencoder_forward.1} parent=0 // pred_check_branch
    %21 = sbr.rel (0) target = $region5
  $region4: #{autoencoder_forward.1} parent=0 // pred_region
    _
  $region5: #{autoencoder_forward.1} parent=0 // pred_fallthru
    _
  // Predicated region
  $region6: #{autoencoder_forward.1} parent=0 // pred_check
    _
  $region7: #{autoencoder_forward.1} parent=0 // pred_check_branch
    %23 = sbr.rel (0) target = $region9
  $region8: #{autoencoder_forward.1} parent=0 // pred_region
    _
  $region9: #{autoencoder_forward.1} parent=0 // pred_fallthru
    _
  // Predicated region
  $region10: #{autoencoder_forward.1} parent=0 // pred_check
    _
  $region11: #{autoencoder_forward.1} parent=0 // pred_check_branch
    %25 = sbr.rel (0) target = $region13
  $region12: #{autoencoder_forward.1} parent=0 // pred_region
    _
  $region13: #{autoencoder_forward.1} parent=0 // pred_fallthru
    _
  // Predicated region
  $region14: #{autoencoder_forward.1} parent=0 // pred_check
    _
  $region15: #{autoencoder_forward.1} parent=0 // pred_check_branch
    %27 = sbr.rel (0) target = $region17
  $region16: #{autoencoder_forward.1} parent=0 // pred_region
    _
  $region17: #{autoencoder_forward.1} parent=0 // pred_fallthru
    _
  // Predicated region
  $region18: #{autoencoder_forward.1} parent=0 // pred_check
    _
  $region19: #{autoencoder_forward.1} parent=0 // pred_check_branch
    %29 = sbr.rel (0) target = $region21
  $region20: #{autoencoder_forward.1} parent=0 // pred_region
    _
  $region21: #{autoencoder_forward.1} parent=0 // pred_fallthru
    _
  // Predicated region
  $region22: #{autoencoder_forward.1} parent=0 // pred_check
    _
  $region23: #{autoencoder_forward.1} parent=0 // pred_check_branch
    %31 = sbr.rel (0) target = $region25
  $region24: #{autoencoder_forward.1} parent=0 // pred_region
    _
  $region25: #{autoencoder_forward.1} parent=0 // pred_fallthru
    _
  // Predicated region
  $region26: #{autoencoder_forward.1} parent=0 // pred_check
    _
  $region27: #{autoencoder_forward.1} parent=0 // pred_check_branch
    %33 = sbr.rel (0) target = $region29
  $region28: #{autoencoder_forward.1} parent=0 // pred_region
    _
  $region29: #{autoencoder_forward.1} parent=0 // pred_fallthru
    _
  // Predicated region
  $region30: #{autoencoder_forward.1} parent=0 // pred_check
    _
  $region31: #{autoencoder_forward.1} parent=0 // pred_check_branch
    %35 = sbr.rel (0) target = $region33
  $region32: #{autoencoder_forward.1} parent=0 // pred_region
    _
  $region33: #{autoencoder_forward.1} parent=0 // pred_fallthru
    _
  // Predicated region
  $region34: #{autoencoder_forward.1} parent=0 // pred_check
    _
  $region35: #{autoencoder_forward.1} parent=0 // pred_check_branch
    %37 = sbr.rel (0) target = $region37
  $region36: #{autoencoder_forward.1} parent=0 // pred_region
    _
  $region37: #{autoencoder_forward.1} parent=0 // pred_fallthru
    _
  // Predicated region
  $region38: #{autoencoder_forward.1} parent=0 // pred_check
    _
  $region39: #{autoencoder_forward.1} parent=0 // pred_check_branch
    %39 = sbr.rel (0) target = $region41
  $region40: #{autoencoder_forward.1} parent=0 // pred_region
    _
  $region41: #{autoencoder_forward.1} parent=0 // pred_fallthru
    _
  // Predicated region
  $region42: #{autoencoder_forward.1} parent=0 // pred_check
    _
  $region43: #{autoencoder_forward.1} parent=0 // pred_check_branch
    %41 = sbr.rel (0) target = $region45
  $region44: #{autoencoder_forward.1} parent=0 // pred_region
    _
  $region45: #{autoencoder_forward.1} parent=0 // pred_fallthru
    _
  // Predicated region
  $region46: #{autoencoder_forward.1} parent=0 // pred_check
    _
  $region47: #{autoencoder_forward.1} parent=0 // pred_check_branch
    %43 = sbr.rel (0) target = $region49
  $region48: #{autoencoder_forward.1} parent=0 // pred_region
    _
  $region49: #{autoencoder_forward.1} parent=0 // pred_fallthru
    _
  // Predicated region
  $region50: #{autoencoder_forward.1} parent=0 // pred_check
    _
  $region51: #{autoencoder_forward.1} parent=0 // pred_check_branch
    %45 = sbr.rel (0) target = $region53
  $region52: #{autoencoder_forward.1} parent=0 // pred_region
    _
  $region53: #{autoencoder_forward.1} parent=0 // pred_fallthru
    _
  // Predicated region
  $region54: #{autoencoder_forward.1} parent=0 // pred_check
    _
  $region55: #{autoencoder_forward.1} parent=0 // pred_check_branch
    %47 = sbr.rel (0) target = $region57
  $region56: #{autoencoder_forward.1} parent=0 // pred_region
    _
  $region57: #{autoencoder_forward.1} parent=0 // pred_fallthru
    _
  // Predicated region
  $region58: #{autoencoder_forward.1} parent=0 // pred_check
    _
  $region59: #{autoencoder_forward.1} parent=0 // pred_check_branch
    %49 = sbr.rel (0) target = $region61
  $region60: #{autoencoder_forward.1} parent=0 // pred_region
    _
  $region61: #{autoencoder_forward.1} parent=0 // pred_fallthru
    _
  %v51 = vld [vmem:[%s0] sm:$0xff]
  %v52 = vld [vmem:[%s0 + $0x8] sm:$0xff]
  %v53 = vld [vmem:[%s1] sm:$0xff]
  %v54 = vld [vmem:[%s1 + $0x8] sm:$0xf]
  %v55 = vld [vmem:[%s1 + $0xc] sm:$0xff]
  %v56 = vld [vmem:[%s1 + $0x14] sm:$0xf]
  %v57 = vld [vmem:[%s1 + $0x18] sm:$0xff]
  %v58 = vld [vmem:[%s1 + $0x20] sm:$0xf]
  %v59 = vld [vmem:[%s1 + $0x24] sm:$0xff]
  %v60 = vld [vmem:[%s1 + $0x2c] sm:$0xf]
  %v61 = vld [vmem:[%s1 + $0x30] sm:$0xff]
  %v62 = vld [vmem:[%s1 + $0x38] sm:$0xf]
  %v63 = vld [vmem:[%s1 + $0x3c] sm:$0xff]
  %v64 = vld [vmem:[%s1 + $0x44] sm:$0xf]
  %v65 = vld [vmem:[%s1 + $0x48] sm:$0xff]
  %v66 = vld [vmem:[%s1 + $0x50] sm:$0xf]
  %v67 = vld [vmem:[%s1 + $0x54] sm:$0xff]
  %v68 = vld [vmem:[%s1 + $0x5c] sm:$0xf]
  %v69 = vld [vmem:[%s1 + $0x60] sm:$0xff]
  %v70 = vld [vmem:[%s1 + $0x68] sm:$0xf]
  %v71 = vld [vmem:[%s1 + $0x6c] sm:$0xff]
  %v72 = vld [vmem:[%s1 + $0x74] sm:$0xf]
  %v73 = vld [vmem:[%s1 + $0x78] sm:$0xff]
  %v74 = vld [vmem:[%s1 + $0x80] sm:$0xf]
  %v75 = vld [vmem:[%s1 + $0x84] sm:$0xff]
  %v76 = vld [vmem:[%s1 + $0x8c] sm:$0xf]
  %v77 = vld [vmem:[%s1 + $0x90] sm:$0xff]
  %v78 = vld [vmem:[%s1 + $0x98] sm:$0xf]
  %v79 = vld [vmem:[%s1 + $0x9c] sm:$0xff]
  %v80 = vld [vmem:[%s1 + $0xa4] sm:$0xf]
  %v81 = vld [vmem:[%s1 + $0xa8] sm:$0xff]
  %v82 = vld [vmem:[%s1 + $0xb0] sm:$0xf]
  %v83 = vld [vmem:[%s1 + $0xb4] sm:$0xff]
  %v84 = vld [vmem:[%s1 + $0xbc] sm:$0xf]
  %v85 = vpack.c.bf16 %v52, %v51
  %v86 = vld [vmem:[%s2] sm:$0x7]
  %v88 = vlaneseq
  %v89 = vshrl.u32 %v88, 7
  %v90 = vsub.s32 0, %v89
  %v91 = vrot.slane %v86, %v90
  %v92 = vlaneseq
  %v93 = vshrl.u32 %v92, 7
  %v94 = vsub.s32 1, %v93
  %v95 = vrot.slane %v86, %v94
  %v96 = vlaneseq
  %v97 = vshrl.u32 %v96, 7
  %v98 = vsub.s32 2, %v97
  %v99 = vrot.slane %v86, %v98
  %v135 = vunpack.c.l.b16 %v53
  %v136 = vunpack.c.h.b16 %v53
  %v137 = vunpack.c.l.b16 %v54
  %v138 = vunpack.c.l.b16 %v55
  %v139 = vunpack.c.h.b16 %v55
  %v140 = vunpack.c.l.b16 %v56
  %v141 = vunpack.c.l.b16 %v57
  %v142 = vunpack.c.h.b16 %v57
  %v143 = vunpack.c.l.b16 %v58
  %v144 = vunpack.c.l.b16 %v59
  %v145 = vunpack.c.h.b16 %v59
  %v146 = vunpack.c.l.b16 %v60
  %v147 = vunpack.c.l.b16 %v61
  %v148 = vunpack.c.h.b16 %v61
  %v149 = vunpack.c.l.b16 %v62
  %v150 = vunpack.c.l.b16 %v63
  %v151 = vunpack.c.h.b16 %v63
  %v152 = vunpack.c.l.b16 %v64
  %v153 = vunpack.c.l.b16 %v65
  %v154 = vunpack.c.h.b16 %v65
  %v155 = vunpack.c.l.b16 %v66
  %v156 = vunpack.c.l.b16 %v67
  %v157 = vunpack.c.h.b16 %v67
  %v158 = vunpack.c.l.b16 %v68
  %v159 = vunpack.c.l.b16 %v69
  %v160 = vunpack.c.h.b16 %v69
  %v161 = vunpack.c.l.b16 %v70
  %v162 = vunpack.c.l.b16 %v71
  %v163 = vunpack.c.h.b16 %v71
  %v164 = vunpack.c.l.b16 %v72
  %v165 = vunpack.c.l.b16 %v73
  %v166 = vunpack.c.h.b16 %v73
  %v167 = vunpack.c.l.b16 %v74
  %v168 = vunpack.c.l.b16 %v75
  %v169 = vunpack.c.h.b16 %v75
  %v170 = vunpack.c.l.b16 %v76
  %v171 = vunpack.c.l.b16 %v77
  %v172 = vunpack.c.h.b16 %v77
  %v173 = vunpack.c.l.b16 %v78
  %v174 = vunpack.c.l.b16 %v79
  %v175 = vunpack.c.h.b16 %v79
  %v176 = vunpack.c.l.b16 %v80
  %v177 = vunpack.c.l.b16 %v81
  %v178 = vunpack.c.h.b16 %v81
  %v179 = vunpack.c.l.b16 %v82
  %v180 = vunpack.c.l.b16 %v83
  %v181 = vunpack.c.h.b16 %v83
  %v182 = vunpack.c.l.b16 %v84
  %v183 = vpack.c.b16 %v138, %v135
  %v184 = vpack.c.b16 %v139, %v136
  %v185 = vpack.c.b16 %v140, %v137
  %v186 = vpack.c.b16 %v144, %v141
  %v187 = vpack.c.b16 %v145, %v142
  %v188 = vpack.c.b16 %v146, %v143
  %v189 = vpack.c.b16 %v150, %v147
  %v190 = vpack.c.b16 %v151, %v148
  %v191 = vpack.c.b16 %v152, %v149
  %v192 = vpack.c.b16 %v156, %v153
  %v193 = vpack.c.b16 %v157, %v154
  %v194 = vpack.c.b16 %v158, %v155
  %v195 = vpack.c.b16 %v162, %v159
  %v196 = vpack.c.b16 %v163, %v160
  %v197 = vpack.c.b16 %v164, %v161
  %v198 = vpack.c.b16 %v168, %v165
  %v199 = vpack.c.b16 %v169, %v166
  %v200 = vpack.c.b16 %v170, %v167
  %v201 = vpack.c.b16 %v174, %v171
  %v202 = vpack.c.b16 %v175, %v172
  %v203 = vpack.c.b16 %v176, %v173
  %v204 = vpack.c.b16 %v180, %v177
  %v205 = vpack.c.b16 %v181, %v178
  %v206 = vpack.c.b16 %v182, %v179
  %231 = vmatprep.subr.bf16.mxu0 %v184
  %232 = vmatpush1.bf16.msra.mxu0 %v183
  %233 = vmatprep.subr.bf16.mxu0 %v187
  %234 = vmatpush1.bf16.msra.mxu0 %v186
  %235 = vmatprep.subr.bf16.mxu0 %v190
  %236 = vmatpush1.bf16.msra.mxu0 %v189
  %237 = vmatprep.subr.bf16.mxu0 %v193
  %238 = vmatpush1.bf16.msra.mxu0 %v192
  %239 = vmatprep.subr.bf16.mxu0 %v196
  %240 = vmatpush1.bf16.msra.mxu0 %v195
  %241 = vmatprep.subr.bf16.mxu0 %v199
  %242 = vmatpush1.bf16.msra.mxu0 %v198
  %243 = vmatprep.subr.bf16.mxu0 %v202
  %244 = vmatpush1.bf16.msra.mxu0 %v201
  %245 = vmatprep.subr.bf16.mxu0 %v205
  %246 = vmatpush1.bf16.msra.mxu0 %v204
  %247 = vmatprep.subr.bf16.mxu0 0
  %248 = vmatpush1.bf16.msra.mxu0 0
  %249 = vmatprep.subr.bf16.mxu0 0
  %250 = vmatpush1.bf16.msra.mxu0 0
  %251 = vmatprep.subr.bf16.mxu0 0
  %252 = vmatpush1.bf16.msra.mxu0 0
  %253 = vmatprep.subr.bf16.mxu0 0
  %254 = vmatpush1.bf16.msra.mxu0 0
  %255 = vmatprep.subr.bf16.mxu0 0
  %256 = vmatpush1.bf16.msra.mxu0 0
  %257 = vmatprep.subr.bf16.mxu0 0
  %258 = vmatpush1.bf16.msra.mxu0 0
  %259 = vmatprep.subr.bf16.mxu0 0
  %260 = vmatpush1.bf16.msra.mxu0 0
  %261 = vmatprep.subr.bf16.mxu0 0
  %262 = vmatpush1.bf16.msra.mxu0 0
  %263 = vmatprep.mubr.bf16.mxu0 0
  %264 = vmatmul.mubr.bf16.gmra.mrb[0].mxu0 %v85
  %v265 = vpop.f32.mrb[0].mxu0
  %v266 = vadd.f32 %v91, %v265
  %v267 = vpop.f32.mrb[0].mxu0
  %v268 = vadd.f32 %v95, %v267
  %v269 = vpop.f32.mrb[0].mxu0
  %v270 = vadd.f32 %v91, %v269
  %v271 = vpop.f32.mrb[0].mxu0
  %v272 = vadd.f32 %v95, %v271
  %273 = vdwg.mxu0
  %274 = vmatprep.subr.bf16.mxu0 0
  %275 = vmatpush1.bf16.msra.mxu0 %v185
  %276 = vmatprep.subr.bf16.mxu0 0
  %277 = vmatpush1.bf16.msra.mxu0 %v188
  %278 = vmatprep.subr.bf16.mxu0 0
  %279 = vmatpush1.bf16.msra.mxu0 %v191
  %280 = vmatprep.subr.bf16.mxu0 0
  %281 = vmatpush1.bf16.msra.mxu0 %v194
  %282 = vmatprep.subr.bf16.mxu0 0
  %283 = vmatpush1.bf16.msra.mxu0 %v197
  %284 = vmatprep.subr.bf16.mxu0 0
  %285 = vmatpush1.bf16.msra.mxu0 %v200
  %286 = vmatprep.subr.bf16.mxu0 0
  %287 = vmatpush1.bf16.msra.mxu0 %v203
  %288 = vmatprep.subr.bf16.mxu0 0
  %289 = vmatpush1.bf16.msra.mxu0 %v206
  %290 = vmatprep.subr.bf16.mxu0 0
  %291 = vmatpush1.bf16.msra.mxu0 0
  %292 = vmatprep.subr.bf16.mxu0 0
  %293 = vmatpush1.bf16.msra.mxu0 0
  %294 = vmatprep.subr.bf16.mxu0 0
  %295 = vmatpush1.bf16.msra.mxu0 0
  %296 = vmatprep.subr.bf16.mxu0 0
  %297 = vmatpush1.bf16.msra.mxu0 0
  %298 = vmatprep.subr.bf16.mxu0 0
  %299 = vmatpush1.bf16.msra.mxu0 0
  %300 = vmatprep.subr.bf16.mxu0 0
  %301 = vmatpush1.bf16.msra.mxu0 0
  %302 = vmatprep.subr.bf16.mxu0 0
  %303 = vmatpush1.bf16.msra.mxu0 0
  %304 = vmatprep.subr.bf16.mxu0 0
  %305 = vmatpush1.bf16.msra.mxu0 0
  %306 = vmatprep.mubr.bf16.mxu0 0
  %307 = vmatmul.mubr.bf16.gmra.mrb[0].mxu0 %v85
  %v308 = vpop.f32.mrb[0].mxu0
  %v309 = vadd.f32 %v99, %v308
  %v310 = vpop.f32.mrb[0].mxu0
  %v311 = vpop.f32.mrb[0].mxu0
  %v312 = vadd.f32 %v99, %v311
  %v313 = vpop.f32.mrb[0].mxu0
  %314 = vdwg.mxu0
  %vm315 = vcmp.gt.f32.partialorder %v266, 0.0
  %vm316 = vcmp.gt.f32.partialorder %v268, 0.0
  %vm317 = vcmp.gt.f32.partialorder %v309, 0.0
  %vm318 = vcmp.gt.f32.partialorder %v270, 0.0
  %vm319 = vcmp.gt.f32.partialorder %v272, 0.0
  %vm320 = vcmp.gt.f32.partialorder %v312, 0.0
  %v321 = vmul.f32 %v266, 0.2
  %v322 = vmul.f32 %v268, 0.2
  %v323 = vmul.f32 %v309, 0.2
  %v324 = vmul.f32 %v270, 0.2
  %v325 = vmul.f32 %v272, 0.2
  %v326 = vmul.f32 %v312, 0.2
  %v327 = vsel %vm315, %v266, %v321
  %v328 = vsel %vm316, %v268, %v322
  %v329 = vsel %vm317, %v309, %v323
  %v330 = vsel %vm318, %v270, %v324
  %v331 = vsel %vm319, %v272, %v325
  %v332 = vsel %vm320, %v312, %v326
  %v333 = vld [vmem:[%s3] sm:$0xf]
  %v334 = vld [vmem:[%s3 + $0x4] sm:$0xf]
  %v335 = vld [vmem:[%s3 + $0x8] sm:$0xf]
  %v336 = vld [vmem:[%s3 + $0xc] sm:$0xf]
  %v337 = vld [vmem:[%s3 + $0x10] sm:$0xf]
  %v338 = vld [vmem:[%s3 + $0x14] sm:$0xf]
  %v339 = vld [vmem:[%s3 + $0x18] sm:$0xf]
  %v340 = vld [vmem:[%s3 + $0x1c] sm:$0xf]
  %v341 = vld [vmem:[%s3 + $0x20] sm:$0xf]
  %v342 = vld [vmem:[%s3 + $0x24] sm:$0xf]
  %v343 = vld [vmem:[%s3 + $0x28] sm:$0xf]
  %v344 = vld [vmem:[%s3 + $0x2c] sm:$0xf]
  %v345 = vld [vmem:[%s3 + $0x30] sm:$0xf]
  %v346 = vld [vmem:[%s3 + $0x34] sm:$0xf]
  %v347 = vld [vmem:[%s3 + $0x38] sm:$0xf]
  %v348 = vld [vmem:[%s3 + $0x3c] sm:$0xf]
  %v349 = vld [vmem:[%s3 + $0x40] sm:$0xf]
  %v350 = vld [vmem:[%s3 + $0x44] sm:$0xf]
  %v351 = vld [vmem:[%s3 + $0x48] sm:$0xf]
  %v352 = vld [vmem:[%s3 + $0x4c] sm:$0xf]
  %v353 = vld [vmem:[%s3 + $0x50] sm:$0xf]
  %v354 = vld [vmem:[%s3 + $0x54] sm:$0xf]
  %v355 = vld [vmem:[%s3 + $0x58] sm:$0xf]
  %v356 = vld [vmem:[%s3 + $0x5c] sm:$0xf]
  %v357 = vld [vmem:[%s3 + $0x60] sm:$0xf]
  %v358 = vld [vmem:[%s3 + $0x64] sm:$0xf]
  %v359 = vld [vmem:[%s3 + $0x68] sm:$0xf]
  %v360 = vld [vmem:[%s3 + $0x6c] sm:$0xf]
  %v361 = vld [vmem:[%s3 + $0x70] sm:$0xf]
  %v362 = vld [vmem:[%s3 + $0x74] sm:$0xf]
  %v363 = vld [vmem:[%s3 + $0x78] sm:$0xf]
  %v364 = vld [vmem:[%s3 + $0x7c] sm:$0xf]
  %v365 = vld [vmem:[%s3 + $0x80] sm:$0xf]
  %v366 = vld [vmem:[%s3 + $0x84] sm:$0xf]
  %v367 = vld [vmem:[%s3 + $0x88] sm:$0xf]
  %v368 = vld [vmem:[%s3 + $0x8c] sm:$0xf]
  %v369 = vld [vmem:[%s3 + $0x90] sm:$0xf]
  %v370 = vld [vmem:[%s3 + $0x94] sm:$0xf]
  %v371 = vld [vmem:[%s3 + $0x98] sm:$0xf]
  %v372 = vld [vmem:[%s3 + $0x9c] sm:$0xf]
  %v373 = vld [vmem:[%s3 + $0xa0] sm:$0xf]
  %v374 = vld [vmem:[%s3 + $0xa4] sm:$0xf]
  %v375 = vld [vmem:[%s3 + $0xa8] sm:$0xf]
  %v376 = vld [vmem:[%s3 + $0xac] sm:$0xf]
  %v377 = vld [vmem:[%s3 + $0xb0] sm:$0xf]
  %v378 = vld [vmem:[%s3 + $0xb4] sm:$0xf]
  %v379 = vld [vmem:[%s3 + $0xb8] sm:$0xf]
  %v380 = vld [vmem:[%s3 + $0xbc] sm:$0xf]
  %v381 = vpack.c.bf16 %v330, %v327
  %v382 = vpack.c.bf16 %v331, %v328
  %v383 = vpack.c.bf16 %v332, %v329
  %v384 = vld [vmem:[%s4] sm:$0x1]
  %v386 = vlaneseq
  %v387 = vshrl.u32 %v386, 7
  %v388 = vsub.s32 0, %v387
  %v389 = vrot.slane %v384, %v388
  %v439 = vunpack.c.l.b16 %v333
  %v440 = vunpack.c.l.b16 %v334
  %v441 = vunpack.c.l.b16 %v335
  %v442 = vunpack.c.l.b16 %v336
  %v443 = vunpack.c.l.b16 %v337
  %v444 = vunpack.c.l.b16 %v338
  %v445 = vunpack.c.l.b16 %v339
  %v446 = vunpack.c.l.b16 %v340
  %v447 = vunpack.c.l.b16 %v341
  %v448 = vunpack.c.l.b16 %v342
  %v449 = vunpack.c.l.b16 %v343
  %v450 = vunpack.c.l.b16 %v344
  %v451 = vunpack.c.l.b16 %v345
  %v452 = vunpack.c.l.b16 %v346
  %v453 = vunpack.c.l.b16 %v347
  %v454 = vunpack.c.l.b16 %v348
  %v455 = vunpack.c.l.b16 %v349
  %v456 = vunpack.c.l.b16 %v350
  %v457 = vunpack.c.l.b16 %v351
  %v458 = vunpack.c.l.b16 %v352
  %v459 = vunpack.c.l.b16 %v353
  %v460 = vunpack.c.l.b16 %v354
  %v461 = vunpack.c.l.b16 %v355
  %v462 = vunpack.c.l.b16 %v356
  %v463 = vunpack.c.l.b16 %v357
  %v464 = vunpack.c.l.b16 %v358
  %v465 = vunpack.c.l.b16 %v359
  %v466 = vunpack.c.l.b16 %v360
  %v467 = vunpack.c.l.b16 %v361
  %v468 = vunpack.c.l.b16 %v362
  %v469 = vunpack.c.l.b16 %v363
  %v470 = vunpack.c.l.b16 %v364
  %v471 = vunpack.c.l.b16 %v365
  %v472 = vunpack.c.l.b16 %v366
  %v473 = vunpack.c.l.b16 %v367
  %v474 = vunpack.c.l.b16 %v368
  %v475 = vunpack.c.l.b16 %v369
  %v476 = vunpack.c.l.b16 %v370
  %v477 = vunpack.c.l.b16 %v371
  %v478 = vunpack.c.l.b16 %v372
  %v479 = vunpack.c.l.b16 %v373
  %v480 = vunpack.c.l.b16 %v374
  %v481 = vunpack.c.l.b16 %v375
  %v482 = vunpack.c.l.b16 %v376
  %v483 = vunpack.c.l.b16 %v377
  %v484 = vunpack.c.l.b16 %v378
  %v485 = vunpack.c.l.b16 %v379
  %v486 = vunpack.c.l.b16 %v380
  %v487 = vpack.c.b16 %v440, %v439
  %v488 = vpack.c.b16 %v442, %v441
  %v489 = vpack.c.b16 %v444, %v443
  %v490 = vpack.c.b16 %v446, %v445
  %v491 = vpack.c.b16 %v448, %v447
  %v492 = vpack.c.b16 %v450, %v449
  %v493 = vpack.c.b16 %v452, %v451
  %v494 = vpack.c.b16 %v454, %v453
  %v495 = vpack.c.b16 %v456, %v455
  %v496 = vpack.c.b16 %v458, %v457
  %v497 = vpack.c.b16 %v460, %v459
  %v498 = vpack.c.b16 %v462, %v461
  %v499 = vpack.c.b16 %v464, %v463
  %v500 = vpack.c.b16 %v466, %v465
  %v501 = vpack.c.b16 %v468, %v467
  %v502 = vpack.c.b16 %v470, %v469
  %v503 = vpack.c.b16 %v472, %v471
  %v504 = vpack.c.b16 %v474, %v473
  %v505 = vpack.c.b16 %v476, %v475
  %v506 = vpack.c.b16 %v478, %v477
  %v507 = vpack.c.b16 %v480, %v479
  %v508 = vpack.c.b16 %v482, %v481
  %v509 = vpack.c.b16 %v484, %v483
  %v510 = vpack.c.b16 %v486, %v485
  %535 = vmatprep.subr.bf16.mxu0 0
  %536 = vmatpush1.bf16.msra.mxu0 %v487
  %537 = vmatprep.subr.bf16.mxu0 0
  %538 = vmatpush1.bf16.msra.mxu0 %v488
  %539 = vmatprep.subr.bf16.mxu0 0
  %540 = vmatpush1.bf16.msra.mxu0 %v489
  %541 = vmatprep.subr.bf16.mxu0 0
  %542 = vmatpush1.bf16.msra.mxu0 %v490
  %543 = vmatprep.subr.bf16.mxu0 0
  %544 = vmatpush1.bf16.msra.mxu0 %v491
  %545 = vmatprep.subr.bf16.mxu0 0
  %546 = vmatpush1.bf16.msra.mxu0 %v492
  %547 = vmatprep.subr.bf16.mxu0 0
  %548 = vmatpush1.bf16.msra.mxu0 %v493
  %549 = vmatprep.subr.bf16.mxu0 0
  %550 = vmatpush1.bf16.msra.mxu0 %v494
  %551 = vmatprep.subr.bf16.mxu0 0
  %552 = vmatpush1.bf16.msra.mxu0 %v495
  %553 = vmatprep.subr.bf16.mxu0 0
  %554 = vmatpush1.bf16.msra.mxu0 %v496
  %555 = vmatprep.subr.bf16.mxu0 0
  %556 = vmatpush1.bf16.msra.mxu0 %v497
  %557 = vmatprep.subr.bf16.mxu0 0
  %558 = vmatpush1.bf16.msra.mxu0 %v498
  %559 = vmatprep.subr.bf16.mxu0 0
  %560 = vmatpush1.bf16.msra.mxu0 %v499
  %561 = vmatprep.subr.bf16.mxu0 0
  %562 = vmatpush1.bf16.msra.mxu0 %v500
  %563 = vmatprep.subr.bf16.mxu0 0
  %564 = vmatpush1.bf16.msra.mxu0 %v501
  %565 = vmatprep.subr.bf16.mxu0 0
  %566 = vmatpush1.bf16.msra.mxu0 %v502
  %567 = vmatprep.mubr.bf16.mxu0 %v382
  %568 = vmatmul.mubr.bf16.gmra.mrb[0].mxu0 %v381
  %v569 = vpop.f32.mrb[0].mxu0
  %v570 = vadd.f32 %v389, %v569
  %v571 = vpop.f32.mrb[0].mxu0
  %v572 = vpop.f32.mrb[0].mxu0
  %v573 = vadd.f32 %v389, %v572
  %v574 = vpop.f32.mrb[0].mxu0
  %575 = vdwg.mxu0
  %576 = vmatprep.subr.bf16.mxu0 0
  %577 = vmatpush1.bf16.msra.mxu0 %v503
  %578 = vmatprep.subr.bf16.mxu0 0
  %579 = vmatpush1.bf16.msra.mxu0 %v504
  %580 = vmatprep.subr.bf16.mxu0 0
  %581 = vmatpush1.bf16.msra.mxu0 %v505
  %582 = vmatprep.subr.bf16.mxu0 0
  %583 = vmatpush1.bf16.msra.mxu0 %v506
  %584 = vmatprep.subr.bf16.mxu0 0
  %585 = vmatpush1.bf16.msra.mxu0 %v507
  %586 = vmatprep.subr.bf16.mxu0 0
  %587 = vmatpush1.bf16.msra.mxu0 %v508
  %588 = vmatprep.subr.bf16.mxu0 0
  %589 = vmatpush1.bf16.msra.mxu0 %v509
  %590 = vmatprep.subr.bf16.mxu0 0
  %591 = vmatpush1.bf16.msra.mxu0 %v510
  %592 = vmatprep.subr.bf16.mxu0 0
  %593 = vmatpush1.bf16.msra.mxu0 0
  %594 = vmatprep.subr.bf16.mxu0 0
  %595 = vmatpush1.bf16.msra.mxu0 0
  %596 = vmatprep.subr.bf16.mxu0 0
  %597 = vmatpush1.bf16.msra.mxu0 0
  %598 = vmatprep.subr.bf16.mxu0 0
  %599 = vmatpush1.bf16.msra.mxu0 0
  %600 = vmatprep.subr.bf16.mxu0 0
  %601 = vmatpush1.bf16.msra.mxu0 0
  %602 = vmatprep.subr.bf16.mxu0 0
  %603 = vmatpush1.bf16.msra.mxu0 0
  %604 = vmatprep.subr.bf16.mxu0 0
  %605 = vmatpush1.bf16.msra.mxu0 0
  %606 = vmatprep.subr.bf16.mxu0 0
  %607 = vmatpush1.bf16.msra.mxu0 0
  %608 = vmatprep.mubr.bf16.mxu0 0
  %609 = vmatmul.mubr.bf16.gmra.mrb[0].mxu0 %v383
  %v610 = vpop.f32.mrb[0].mxu0
  %v611 = vadd.f32 %v570, %v610
  %v612 = vpop.f32.mrb[0].mxu0
  %v613 = vpop.f32.mrb[0].mxu0
  %v614 = vadd.f32 %v573, %v613
  %v615 = vpop.f32.mrb[0].mxu0
  %616 = vdwg.mxu0
  %vm617 = vcmp.gt.f32.partialorder %v611, 0.0
  %vm618 = vcmp.gt.f32.partialorder %v614, 0.0
  %v619 = vmul.f32 %v611, 0.2
  %v620 = vmul.f32 %v614, 0.2
  %v621 = vsel %vm617, %v611, %v619
  %v622 = vsel %vm618, %v614, %v620
  %v623 = vld [vmem:[%s5] sm:$0xf]
  %v624 = vld [vmem:[%s5 + $0x4] sm:$0xf]
  %v625 = vld [vmem:[%s5 + $0x8] sm:$0xf]
  %v626 = vld [vmem:[%s5 + $0xc] sm:$0xf]
  %v627 = vld [vmem:[%s5 + $0x10] sm:$0xf]
  %v628 = vld [vmem:[%s5 + $0x14] sm:$0xf]
  %v629 = vld [vmem:[%s5 + $0x18] sm:$0xf]
  %v630 = vld [vmem:[%s5 + $0x1c] sm:$0xf]
  %v631 = vld [vmem:[%s5 + $0x20] sm:$0xf]
  %v632 = vld [vmem:[%s5 + $0x24] sm:$0xf]
  %v633 = vld [vmem:[%s5 + $0x28] sm:$0xf]
  %v634 = vld [vmem:[%s5 + $0x2c] sm:$0xf]
  %v635 = vld [vmem:[%s5 + $0x30] sm:$0xf]
  %v636 = vld [vmem:[%s5 + $0x34] sm:$0xf]
  %v637 = vld [vmem:[%s5 + $0x38] sm:$0xf]
  %v638 = vld [vmem:[%s5 + $0x3c] sm:$0xf]
  %v639 = vpack.c.bf16 %v622, %v621
  %v640 = vld [vmem:[%s6] sm:$0x1]
  %v642 = vlaneseq
  %v643 = vshrl.u32 %v642, 7
  %v644 = vsub.s32 0, %v643
  %v645 = vrot.slane %v640, %v644
  %v663 = vunpack.c.l.b16 %v623
  %v664 = vunpack.c.l.b16 %v624
  %v665 = vunpack.c.l.b16 %v625
  %v666 = vunpack.c.l.b16 %v626
  %v667 = vunpack.c.l.b16 %v627
  %v668 = vunpack.c.l.b16 %v628
  %v669 = vunpack.c.l.b16 %v629
  %v670 = vunpack.c.l.b16 %v630
  %v671 = vunpack.c.l.b16 %v631
  %v672 = vunpack.c.l.b16 %v632
  %v673 = vunpack.c.l.b16 %v633
  %v674 = vunpack.c.l.b16 %v634
  %v675 = vunpack.c.l.b16 %v635
  %v676 = vunpack.c.l.b16 %v636
  %v677 = vunpack.c.l.b16 %v637
  %v678 = vunpack.c.l.b16 %v638
  %v679 = vpack.c.b16 %v664, %v663
  %v680 = vpack.c.b16 %v666, %v665
  %v681 = vpack.c.b16 %v668, %v667
  %v682 = vpack.c.b16 %v670, %v669
  %v683 = vpack.c.b16 %v672, %v671
  %v684 = vpack.c.b16 %v674, %v673
  %v685 = vpack.c.b16 %v676, %v675
  %v686 = vpack.c.b16 %v678, %v677
  %695 = vmatprep.subr.bf16.mxu0 0
  %696 = vmatpush1.bf16.msra.mxu0 %v679
  %697 = vmatprep.subr.bf16.mxu0 0
  %698 = vmatpush1.bf16.msra.mxu0 %v680
  %699 = vmatprep.subr.bf16.mxu0 0
  %700 = vmatpush1.bf16.msra.mxu0 %v681
  %701 = vmatprep.subr.bf16.mxu0 0
  %702 = vmatpush1.bf16.msra.mxu0 %v682
  %703 = vmatprep.subr.bf16.mxu0 0
  %704 = vmatpush1.bf16.msra.mxu0 %v683
  %705 = vmatprep.subr.bf16.mxu0 0
  %706 = vmatpush1.bf16.msra.mxu0 %v684
  %707 = vmatprep.subr.bf16.mxu0 0
  %708 = vmatpush1.bf16.msra.mxu0 %v685
  %709 = vmatprep.subr.bf16.mxu0 0
  %710 = vmatpush1.bf16.msra.mxu0 %v686
  %711 = vmatprep.subr.bf16.mxu0 0
  %712 = vmatpush1.bf16.msra.mxu0 0
  %713 = vmatprep.subr.bf16.mxu0 0
  %714 = vmatpush1.bf16.msra.mxu0 0
  %715 = vmatprep.subr.bf16.mxu0 0
  %716 = vmatpush1.bf16.msra.mxu0 0
  %717 = vmatprep.subr.bf16.mxu0 0
  %718 = vmatpush1.bf16.msra.mxu0 0
  %719 = vmatprep.subr.bf16.mxu0 0
  %720 = vmatpush1.bf16.msra.mxu0 0
  %721 = vmatprep.subr.bf16.mxu0 0
  %722 = vmatpush1.bf16.msra.mxu0 0
  %723 = vmatprep.subr.bf16.mxu0 0
  %724 = vmatpush1.bf16.msra.mxu0 0
  %725 = vmatprep.subr.bf16.mxu0 0
  %726 = vmatpush1.bf16.msra.mxu0 0
  %727 = vmatprep.mubr.bf16.mxu0 0
  %728 = vmatmul.mubr.bf16.gmra.mrb[0].mxu0 %v639
  %v729 = vpop.f32.mrb[0].mxu0
  %v730 = vadd.f32 %v645, %v729
  %v731 = vpop.f32.mrb[0].mxu0
  %v732 = vpop.f32.mrb[0].mxu0
  %v733 = vadd.f32 %v645, %v732
  %v734 = vpop.f32.mrb[0].mxu0
  %735 = vdwg.mxu0
  %v736 = vtanh.pop %v730
  %v737 = vtanh.pop %v733
  %v738 = vld [vmem:[%s7] sm:$0xf]
  %v739 = vld [vmem:[%s7 + $0x4] sm:$0xf]
  %v740 = vld [vmem:[%s7 + $0x8] sm:$0xf]
  %v741 = vld [vmem:[%s7 + $0xc] sm:$0xf]
  %v742 = vld [vmem:[%s7 + $0x10] sm:$0xf]
  %v743 = vld [vmem:[%s7 + $0x14] sm:$0xf]
  %v744 = vld [vmem:[%s7 + $0x18] sm:$0xf]
  %v745 = vld [vmem:[%s7 + $0x1c] sm:$0xf]
  %v746 = vld [vmem:[%s7 + $0x20] sm:$0xf]
  %v747 = vld [vmem:[%s7 + $0x24] sm:$0xf]
  %v748 = vld [vmem:[%s7 + $0x28] sm:$0xf]
  %v749 = vld [vmem:[%s7 + $0x2c] sm:$0xf]
  %v750 = vld [vmem:[%s7 + $0x30] sm:$0xf]
  %v751 = vld [vmem:[%s7 + $0x34] sm:$0xf]
  %v752 = vld [vmem:[%s7 + $0x38] sm:$0xf]
  %v753 = vld [vmem:[%s7 + $0x3c] sm:$0xf]
  %v754 = vpack.c.bf16 %v737, %v736
  %v755 = vld [vmem:[%s8] sm:$0x1]
  %v757 = vlaneseq
  %v758 = vshrl.u32 %v757, 7
  %v759 = vsub.s32 0, %v758
  %v760 = vrot.slane %v755, %v759
  %v778 = vunpack.c.l.b16 %v738
  %v779 = vunpack.c.l.b16 %v739
  %v780 = vunpack.c.l.b16 %v740
  %v781 = vunpack.c.l.b16 %v741
  %v782 = vunpack.c.l.b16 %v742
  %v783 = vunpack.c.l.b16 %v743
  %v784 = vunpack.c.l.b16 %v744
  %v785 = vunpack.c.l.b16 %v745
  %v786 = vunpack.c.l.b16 %v746
  %v787 = vunpack.c.l.b16 %v747
  %v788 = vunpack.c.l.b16 %v748
  %v789 = vunpack.c.l.b16 %v749
  %v790 = vunpack.c.l.b16 %v750
  %v791 = vunpack.c.l.b16 %v751
  %v792 = vunpack.c.l.b16 %v752
  %v793 = vunpack.c.l.b16 %v753
  %v794 = vpack.c.b16 %v779, %v778
  %v795 = vpack.c.b16 %v781, %v780
  %v796 = vpack.c.b16 %v783, %v782
  %v797 = vpack.c.b16 %v785, %v784
  %v798 = vpack.c.b16 %v787, %v786
  %v799 = vpack.c.b16 %v789, %v788
  %v800 = vpack.c.b16 %v791, %v790
  %v801 = vpack.c.b16 %v793, %v792
  %810 = vmatprep.subr.bf16.mxu0 0
  %811 = vmatpush1.bf16.msra.mxu0 %v794
  %812 = vmatprep.subr.bf16.mxu0 0
  %813 = vmatpush1.bf16.msra.mxu0 %v795
  %814 = vmatprep.subr.bf16.mxu0 0
  %815 = vmatpush1.bf16.msra.mxu0 %v796
  %816 = vmatprep.subr.bf16.mxu0 0
  %817 = vmatpush1.bf16.msra.mxu0 %v797
  %818 = vmatprep.subr.bf16.mxu0 0
  %819 = vmatpush1.bf16.msra.mxu0 %v798
  %820 = vmatprep.subr.bf16.mxu0 0
  %821 = vmatpush1.bf16.msra.mxu0 %v799
  %822 = vmatprep.subr.bf16.mxu0 0
  %823 = vmatpush1.bf16.msra.mxu0 %v800
  %824 = vmatprep.subr.bf16.mxu0 0
  %825 = vmatpush1.bf16.msra.mxu0 %v801
  %826 = vmatprep.subr.bf16.mxu0 0
  %827 = vmatpush1.bf16.msra.mxu0 0
  %828 = vmatprep.subr.bf16.mxu0 0
  %829 = vmatpush1.bf16.msra.mxu0 0
  %830 = vmatprep.subr.bf16.mxu0 0
  %831 = vmatpush1.bf16.msra.mxu0 0
  %832 = vmatprep.subr.bf16.mxu0 0
  %833 = vmatpush1.bf16.msra.mxu0 0
  %834 = vmatprep.subr.bf16.mxu0 0
  %835 = vmatpush1.bf16.msra.mxu0 0
  %836 = vmatprep.subr.bf16.mxu0 0
  %837 = vmatpush1.bf16.msra.mxu0 0
  %838 = vmatprep.subr.bf16.mxu0 0
  %839 = vmatpush1.bf16.msra.mxu0 0
  %840 = vmatprep.subr.bf16.mxu0 0
  %841 = vmatpush1.bf16.msra.mxu0 0
  %842 = vmatprep.mubr.bf16.mxu0 0
  %843 = vmatmul.mubr.bf16.gmra.mrb[0].mxu0 %v754
  %v844 = vpop.f32.mrb[0].mxu0
  %v845 = vadd.f32 %v760, %v844
  %v846 = vpop.f32.mrb[0].mxu0
  %v847 = vpop.f32.mrb[0].mxu0
  %v848 = vadd.f32 %v760, %v847
  %v849 = vpop.f32.mrb[0].mxu0
  %850 = vdwg.mxu0
  %vm851 = vcmp.gt.f32.partialorder %v845, 0.0
  %vm852 = vcmp.gt.f32.partialorder %v848, 0.0
  %v853 = vmul.f32 %v845, 0.2
  %v854 = vmul.f32 %v848, 0.2
  %v855 = vsel %vm851, %v845, %v853
  %v856 = vsel %vm852, %v848, %v854
  %v857 = vld [vmem:[%s9] sm:$0xff]
  %v858 = vld [vmem:[%s9 + $0x8] sm:$0xff]
  %v859 = vld [vmem:[%s9 + $0x10] sm:$0xff]
  %v860 = vld [vmem:[%s9 + $0x18] sm:$0xff]
  %v861 = vld [vmem:[%s9 + $0x20] sm:$0xff]
  %v862 = vld [vmem:[%s9 + $0x28] sm:$0xff]
  %v863 = vld [vmem:[%s9 + $0x30] sm:$0xff]
  %v864 = vld [vmem:[%s9 + $0x38] sm:$0xff]
  %v865 = vld [vmem:[%s9 + $0x40] sm:$0xff]
  %v866 = vld [vmem:[%s9 + $0x48] sm:$0xff]
  %v867 = vld [vmem:[%s9 + $0x50] sm:$0xff]
  %v868 = vld [vmem:[%s9 + $0x58] sm:$0xff]
  %v869 = vld [vmem:[%s9 + $0x60] sm:$0xff]
  %v870 = vld [vmem:[%s9 + $0x68] sm:$0xff]
  %v871 = vld [vmem:[%s9 + $0x70] sm:$0xff]
  %v872 = vld [vmem:[%s9 + $0x78] sm:$0xff]
  %v873 = vpack.c.bf16 %v856, %v855
  %v874 = vld [vmem:[%s10] sm:$0x3]
  %v876 = vlaneseq
  %v877 = vshrl.u32 %v876, 7
  %v878 = vsub.s32 0, %v877
  %v879 = vrot.slane %v874, %v878
  %v880 = vlaneseq
  %v881 = vshrl.u32 %v880, 7
  %v882 = vsub.s32 1, %v881
  %v883 = vrot.slane %v874, %v882
  %v902 = vunpack.c.l.b16 %v857
  %v903 = vunpack.c.h.b16 %v857
  %v904 = vunpack.c.l.b16 %v858
  %v905 = vunpack.c.h.b16 %v858
  %v906 = vunpack.c.l.b16 %v859
  %v907 = vunpack.c.h.b16 %v859
  %v908 = vunpack.c.l.b16 %v860
  %v909 = vunpack.c.h.b16 %v860
  %v910 = vunpack.c.l.b16 %v861
  %v911 = vunpack.c.h.b16 %v861
  %v912 = vunpack.c.l.b16 %v862
  %v913 = vunpack.c.h.b16 %v862
  %v914 = vunpack.c.l.b16 %v863
  %v915 = vunpack.c.h.b16 %v863
  %v916 = vunpack.c.l.b16 %v864
  %v917 = vunpack.c.h.b16 %v864
  %v918 = vunpack.c.l.b16 %v865
  %v919 = vunpack.c.h.b16 %v865
  %v920 = vunpack.c.l.b16 %v866
  %v921 = vunpack.c.h.b16 %v866
  %v922 = vunpack.c.l.b16 %v867
  %v923 = vunpack.c.h.b16 %v867
  %v924 = vunpack.c.l.b16 %v868
  %v925 = vunpack.c.h.b16 %v868
  %v926 = vunpack.c.l.b16 %v869
  %v927 = vunpack.c.h.b16 %v869
  %v928 = vunpack.c.l.b16 %v870
  %v929 = vunpack.c.h.b16 %v870
  %v930 = vunpack.c.l.b16 %v871
  %v931 = vunpack.c.h.b16 %v871
  %v932 = vunpack.c.l.b16 %v872
  %v933 = vunpack.c.h.b16 %v872
  %v934 = vpack.c.b16 %v904, %v902
  %v935 = vpack.c.b16 %v905, %v903
  %v936 = vpack.c.b16 %v908, %v906
  %v937 = vpack.c.b16 %v909, %v907
  %v938 = vpack.c.b16 %v912, %v910
  %v939 = vpack.c.b16 %v913, %v911
  %v940 = vpack.c.b16 %v916, %v914
  %v941 = vpack.c.b16 %v917, %v915
  %v942 = vpack.c.b16 %v920, %v918
  %v943 = vpack.c.b16 %v921, %v919
  %v944 = vpack.c.b16 %v924, %v922
  %v945 = vpack.c.b16 %v925, %v923
  %v946 = vpack.c.b16 %v928, %v926
  %v947 = vpack.c.b16 %v929, %v927
  %v948 = vpack.c.b16 %v932, %v930
  %v949 = vpack.c.b16 %v933, %v931
  %966 = vmatprep.subr.bf16.mxu0 %v935
  %967 = vmatpush1.bf16.msra.mxu0 %v934
  %968 = vmatprep.subr.bf16.mxu0 %v937
  %969 = vmatpush1.bf16.msra.mxu0 %v936
  %970 = vmatprep.subr.bf16.mxu0 %v939
  %971 = vmatpush1.bf16.msra.mxu0 %v938
  %972 = vmatprep.subr.bf16.mxu0 %v941
  %973 = vmatpush1.bf16.msra.mxu0 %v940
  %974 = vmatprep.subr.bf16.mxu0 %v943
  %975 = vmatpush1.bf16.msra.mxu0 %v942
  %976 = vmatprep.subr.bf16.mxu0 %v945
  %977 = vmatpush1.bf16.msra.mxu0 %v944
  %978 = vmatprep.subr.bf16.mxu0 %v947
  %979 = vmatpush1.bf16.msra.mxu0 %v946
  %980 = vmatprep.subr.bf16.mxu0 %v949
  %981 = vmatpush1.bf16.msra.mxu0 %v948
  %982 = vmatprep.subr.bf16.mxu0 0
  %983 = vmatpush1.bf16.msra.mxu0 0
  %984 = vmatprep.subr.bf16.mxu0 0
  %985 = vmatpush1.bf16.msra.mxu0 0
  %986 = vmatprep.subr.bf16.mxu0 0
  %987 = vmatpush1.bf16.msra.mxu0 0
  %988 = vmatprep.subr.bf16.mxu0 0
  %989 = vmatpush1.bf16.msra.mxu0 0
  %990 = vmatprep.subr.bf16.mxu0 0
  %991 = vmatpush1.bf16.msra.mxu0 0
  %992 = vmatprep.subr.bf16.mxu0 0
  %993 = vmatpush1.bf16.msra.mxu0 0
  %994 = vmatprep.subr.bf16.mxu0 0
  %995 = vmatpush1.bf16.msra.mxu0 0
  %996 = vmatprep.subr.bf16.mxu0 0
  %997 = vmatpush1.bf16.msra.mxu0 0
  %998 = vmatprep.mubr.bf16.mxu0 0
  %999 = vmatmul.mubr.bf16.gmra.mrb[0].mxu0 %v873
  %v1000 = vpop.f32.mrb[0].mxu0
  %v1001 = vadd.f32 %v879, %v1000
  %v1002 = vpop.f32.mrb[0].mxu0
  %v1003 = vadd.f32 %v883, %v1002
  %v1004 = vpop.f32.mrb[0].mxu0
  %v1005 = vadd.f32 %v879, %v1004
  %v1006 = vpop.f32.mrb[0].mxu0
  %v1007 = vadd.f32 %v883, %v1006
  %1008 = vdwg.mxu0
  %vm1009 = vcmp.gt.f32.partialorder %v1001, 0.0
  %vm1010 = vcmp.gt.f32.partialorder %v1003, 0.0
  %vm1011 = vcmp.gt.f32.partialorder %v1005, 0.0
  %vm1012 = vcmp.gt.f32.partialorder %v1007, 0.0
  %v1013 = vmul.f32 %v1001, 0.2
  %v1014 = vmul.f32 %v1003, 0.2
  %v1015 = vmul.f32 %v1005, 0.2
  %v1016 = vmul.f32 %v1007, 0.2
  %v1017 = vsel %vm1009, %v1001, %v1013
  %v1018 = vsel %vm1010, %v1003, %v1014
  %v1019 = vsel %vm1011, %v1005, %v1015
  %v1020 = vsel %vm1012, %v1007, %v1016
  %v1021 = vld [vmem:[%s11] sm:$0xff]
  %v1022 = vld [vmem:[%s11 + $0x8] sm:$0xff]
  %v1023 = vld [vmem:[%s11 + $0x10] sm:$0xff]
  %v1024 = vld [vmem:[%s11 + $0x18] sm:$0xff]
  %v1025 = vld [vmem:[%s11 + $0x20] sm:$0xff]
  %v1026 = vld [vmem:[%s11 + $0x28] sm:$0xff]
  %v1027 = vld [vmem:[%s11 + $0x30] sm:$0xff]
  %v1028 = vld [vmem:[%s11 + $0x38] sm:$0xff]
  %v1029 = vld [vmem:[%s11 + $0x40] sm:$0xff]
  %v1030 = vld [vmem:[%s11 + $0x48] sm:$0xff]
  %v1031 = vld [vmem:[%s11 + $0x50] sm:$0xff]
  %v1032 = vld [vmem:[%s11 + $0x58] sm:$0xff]
  %v1033 = vld [vmem:[%s11 + $0x60] sm:$0xff]
  %v1034 = vld [vmem:[%s11 + $0x68] sm:$0xff]
  %v1035 = vld [vmem:[%s11 + $0x70] sm:$0xff]
  %v1036 = vld [vmem:[%s11 + $0x78] sm:$0xff]
  %v1037 = vld [vmem:[%s11 + $0x80] sm:$0xff]
  %v1038 = vld [vmem:[%s11 + $0x88] sm:$0xff]
  %v1039 = vld [vmem:[%s11 + $0x90] sm:$0xff]
  %v1040 = vld [vmem:[%s11 + $0x98] sm:$0xff]
  %v1041 = vld [vmem:[%s11 + $0xa0] sm:$0xff]
  %v1042 = vld [vmem:[%s11 + $0xa8] sm:$0xff]
  %v1043 = vld [vmem:[%s11 + $0xb0] sm:$0xff]
  %v1044 = vld [vmem:[%s11 + $0xb8] sm:$0xff]
  %v1045 = vld [vmem:[%s11 + $0xc0] sm:$0xff]
  %v1046 = vld [vmem:[%s11 + $0xc8] sm:$0xff]
  %v1047 = vld [vmem:[%s11 + $0xd0] sm:$0xff]
  %v1048 = vld [vmem:[%s11 + $0xd8] sm:$0xff]
  %v1049 = vld [vmem:[%s11 + $0xe0] sm:$0xff]
  %v1050 = vld [vmem:[%s11 + $0xe8] sm:$0xff]
  %v1051 = vld [vmem:[%s11 + $0xf0] sm:$0xff]
  %v1052 = vld [vmem:[%s11 + $0xf8] sm:$0xff]
  %v1053 = vld [vmem:[%s11 + $0x100] sm:$0xff]
  %v1054 = vld [vmem:[%s11 + $0x108] sm:$0xff]
  %v1055 = vld [vmem:[%s11 + $0x110] sm:$0xff]
  %v1056 = vld [vmem:[%s11 + $0x118] sm:$0xff]
  %v1057 = vld [vmem:[%s11 + $0x120] sm:$0xff]
  %v1058 = vld [vmem:[%s11 + $0x128] sm:$0xff]
  %v1059 = vld [vmem:[%s11 + $0x130] sm:$0xff]
  %v1060 = vld [vmem:[%s11 + $0x138] sm:$0xff]
  %v1061 = vld [vmem:[%s11 + $0x140] sm:$0xff]
  %v1062 = vld [vmem:[%s11 + $0x148] sm:$0xff]
  %v1063 = vld [vmem:[%s11 + $0x150] sm:$0xff]
  %v1064 = vld [vmem:[%s11 + $0x158] sm:$0xff]
  %v1065 = vld [vmem:[%s11 + $0x160] sm:$0xff]
  %v1066 = vld [vmem:[%s11 + $0x168] sm:$0xff]
  %v1067 = vld [vmem:[%s11 + $0x170] sm:$0xff]
  %v1068 = vld [vmem:[%s11 + $0x178] sm:$0xff]
  %v1069 = vld [vmem:[%s11 + $0x180] sm:$0xff]
  %v1070 = vld [vmem:[%s11 + $0x188] sm:$0xff]
  %v1071 = vld [vmem:[%s11 + $0x190] sm:$0xff]
  %v1072 = vld [vmem:[%s11 + $0x198] sm:$0xff]
  %v1073 = vld [vmem:[%s11 + $0x1a0] sm:$0xff]
  %v1074 = vld [vmem:[%s11 + $0x1a8] sm:$0xff]
  %v1075 = vld [vmem:[%s11 + $0x1b0] sm:$0xff]
  %v1076 = vld [vmem:[%s11 + $0x1b8] sm:$0xff]
  %v1077 = vld [vmem:[%s11 + $0x1c0] sm:$0xff]
  %v1078 = vld [vmem:[%s11 + $0x1c8] sm:$0xff]
  %v1079 = vld [vmem:[%s11 + $0x1d0] sm:$0xff]
  %v1080 = vld [vmem:[%s11 + $0x1d8] sm:$0xff]
  %v1081 = vld [vmem:[%s11 + $0x1e0] sm:$0xff]
  %v1082 = vld [vmem:[%s11 + $0x1e8] sm:$0xff]
  %v1083 = vld [vmem:[%s11 + $0x1f0] sm:$0xff]
  %v1084 = vld [vmem:[%s11 + $0x1f8] sm:$0xff]
  %v1085 = vpack.c.bf16 %v1019, %v1017
  %v1086 = vpack.c.bf16 %v1020, %v1018
  %v1087 = vld [vmem:[%s12] sm:$0xf]
  %v1089 = vlaneseq
  %v1090 = vshrl.u32 %v1089, 7
  %v1091 = vsub.s32 0, %v1090
  %v1092 = vrot.slane %v1087, %v1091
  %v1093 = vlaneseq
  %v1094 = vshrl.u32 %v1093, 7
  %v1095 = vsub.s32 1, %v1094
  %v1096 = vrot.slane %v1087, %v1095
  %v1097 = vlaneseq
  %v1098 = vshrl.u32 %v1097, 7
  %v1099 = vsub.s32 2, %v1098
  %v1100 = vrot.slane %v1087, %v1099
  %v1101 = vlaneseq
  %v1102 = vshrl.u32 %v1101, 7
  %v1103 = vsub.s32 3, %v1102
  %v1104 = vrot.slane %v1087, %v1103
  %v1173 = vunpack.c.l.b16 %v1021
  %v1174 = vunpack.c.h.b16 %v1021
  %v1175 = vunpack.c.l.b16 %v1022
  %v1176 = vunpack.c.h.b16 %v1022
  %v1177 = vunpack.c.l.b16 %v1023
  %v1178 = vunpack.c.h.b16 %v1023
  %v1179 = vunpack.c.l.b16 %v1024
  %v1180 = vunpack.c.h.b16 %v1024
  %v1181 = vunpack.c.l.b16 %v1025
  %v1182 = vunpack.c.h.b16 %v1025
  %v1183 = vunpack.c.l.b16 %v1026
  %v1184 = vunpack.c.h.b16 %v1026
  %v1185 = vunpack.c.l.b16 %v1027
  %v1186 = vunpack.c.h.b16 %v1027
  %v1187 = vunpack.c.l.b16 %v1028
  %v1188 = vunpack.c.h.b16 %v1028
  %v1189 = vunpack.c.l.b16 %v1029
  %v1190 = vunpack.c.h.b16 %v1029
  %v1191 = vunpack.c.l.b16 %v1030
  %v1192 = vunpack.c.h.b16 %v1030
  %v1193 = vunpack.c.l.b16 %v1031
  %v1194 = vunpack.c.h.b16 %v1031
  %v1195 = vunpack.c.l.b16 %v1032
  %v1196 = vunpack.c.h.b16 %v1032
  %v1197 = vunpack.c.l.b16 %v1033
  %v1198 = vunpack.c.h.b16 %v1033
  %v1199 = vunpack.c.l.b16 %v1034
  %v1200 = vunpack.c.h.b16 %v1034
  %v1201 = vunpack.c.l.b16 %v1035
  %v1202 = vunpack.c.h.b16 %v1035
  %v1203 = vunpack.c.l.b16 %v1036
  %v1204 = vunpack.c.h.b16 %v1036
  %v1205 = vunpack.c.l.b16 %v1037
  %v1206 = vunpack.c.h.b16 %v1037
  %v1207 = vunpack.c.l.b16 %v1038
  %v1208 = vunpack.c.h.b16 %v1038
  %v1209 = vunpack.c.l.b16 %v1039
  %v1210 = vunpack.c.h.b16 %v1039
  %v1211 = vunpack.c.l.b16 %v1040
  %v1212 = vunpack.c.h.b16 %v1040
  %v1213 = vunpack.c.l.b16 %v1041
  %v1214 = vunpack.c.h.b16 %v1041
  %v1215 = vunpack.c.l.b16 %v1042
  %v1216 = vunpack.c.h.b16 %v1042
  %v1217 = vunpack.c.l.b16 %v1043
  %v1218 = vunpack.c.h.b16 %v1043
  %v1219 = vunpack.c.l.b16 %v1044
  %v1220 = vunpack.c.h.b16 %v1044
  %v1221 = vunpack.c.l.b16 %v1045
  %v1222 = vunpack.c.h.b16 %v1045
  %v1223 = vunpack.c.l.b16 %v1046
  %v1224 = vunpack.c.h.b16 %v1046
  %v1225 = vunpack.c.l.b16 %v1047
  %v1226 = vunpack.c.h.b16 %v1047
  %v1227 = vunpack.c.l.b16 %v1048
  %v1228 = vunpack.c.h.b16 %v1048
  %v1229 = vunpack.c.l.b16 %v1049
  %v1230 = vunpack.c.h.b16 %v1049
  %v1231 = vunpack.c.l.b16 %v1050
  %v1232 = vunpack.c.h.b16 %v1050
  %v1233 = vunpack.c.l.b16 %v1051
  %v1234 = vunpack.c.h.b16 %v1051
  %v1235 = vunpack.c.l.b16 %v1052
  %v1236 = vunpack.c.h.b16 %v1052
  %v1237 = vunpack.c.l.b16 %v1053
  %v1238 = vunpack.c.h.b16 %v1053
  %v1239 = vunpack.c.l.b16 %v1054
  %v1240 = vunpack.c.h.b16 %v1054
  %v1241 = vunpack.c.l.b16 %v1055
  %v1242 = vunpack.c.h.b16 %v1055
  %v1243 = vunpack.c.l.b16 %v1056
  %v1244 = vunpack.c.h.b16 %v1056
  %v1245 = vunpack.c.l.b16 %v1057
  %v1246 = vunpack.c.h.b16 %v1057
  %v1247 = vunpack.c.l.b16 %v1058
  %v1248 = vunpack.c.h.b16 %v1058
  %v1249 = vunpack.c.l.b16 %v1059
  %v1250 = vunpack.c.h.b16 %v1059
  %v1251 = vunpack.c.l.b16 %v1060
  %v1252 = vunpack.c.h.b16 %v1060
  %v1253 = vunpack.c.l.b16 %v1061
  %v1254 = vunpack.c.h.b16 %v1061
  %v1255 = vunpack.c.l.b16 %v1062
  %v1256 = vunpack.c.h.b16 %v1062
  %v1257 = vunpack.c.l.b16 %v1063
  %v1258 = vunpack.c.h.b16 %v1063
  %v1259 = vunpack.c.l.b16 %v1064
  %v1260 = vunpack.c.h.b16 %v1064
  %v1261 = vunpack.c.l.b16 %v1065
  %v1262 = vunpack.c.h.b16 %v1065
  %v1263 = vunpack.c.l.b16 %v1066
  %v1264 = vunpack.c.h.b16 %v1066
  %v1265 = vunpack.c.l.b16 %v1067
  %v1266 = vunpack.c.h.b16 %v1067
  %v1267 = vunpack.c.l.b16 %v1068
  %v1268 = vunpack.c.h.b16 %v1068
  %v1269 = vunpack.c.l.b16 %v1069
  %v1270 = vunpack.c.h.b16 %v1069
  %v1271 = vunpack.c.l.b16 %v1070
  %v1272 = vunpack.c.h.b16 %v1070
  %v1273 = vunpack.c.l.b16 %v1071
  %v1274 = vunpack.c.h.b16 %v1071
  %v1275 = vunpack.c.l.b16 %v1072
  %v1276 = vunpack.c.h.b16 %v1072
  %v1277 = vunpack.c.l.b16 %v1073
  %v1278 = vunpack.c.h.b16 %v1073
  %v1279 = vunpack.c.l.b16 %v1074
  %v1280 = vunpack.c.h.b16 %v1074
  %v1281 = vunpack.c.l.b16 %v1075
  %v1282 = vunpack.c.h.b16 %v1075
  %v1283 = vunpack.c.l.b16 %v1076
  %v1284 = vunpack.c.h.b16 %v1076
  %v1285 = vunpack.c.l.b16 %v1077
  %v1286 = vunpack.c.h.b16 %v1077
  %v1287 = vunpack.c.l.b16 %v1078
  %v1288 = vunpack.c.h.b16 %v1078
  %v1289 = vunpack.c.l.b16 %v1079
  %v1290 = vunpack.c.h.b16 %v1079
  %v1291 = vunpack.c.l.b16 %v1080
  %v1292 = vunpack.c.h.b16 %v1080
  %v1293 = vunpack.c.l.b16 %v1081
  %v1294 = vunpack.c.h.b16 %v1081
  %v1295 = vunpack.c.l.b16 %v1082
  %v1296 = vunpack.c.h.b16 %v1082
  %v1297 = vunpack.c.l.b16 %v1083
  %v1298 = vunpack.c.h.b16 %v1083
  %v1299 = vunpack.c.l.b16 %v1084
  %v1300 = vunpack.c.h.b16 %v1084
  %v1301 = vpack.c.b16 %v1177, %v1173
  %v1302 = vpack.c.b16 %v1178, %v1174
  %v1303 = vpack.c.b16 %v1179, %v1175
  %v1304 = vpack.c.b16 %v1180, %v1176
  %v1305 = vpack.c.b16 %v1185, %v1181
  %v1306 = vpack.c.b16 %v1186, %v1182
  %v1307 = vpack.c.b16 %v1187, %v1183
  %v1308 = vpack.c.b16 %v1188, %v1184
  %v1309 = vpack.c.b16 %v1193, %v1189
  %v1310 = vpack.c.b16 %v1194, %v1190
  %v1311 = vpack.c.b16 %v1195, %v1191
  %v1312 = vpack.c.b16 %v1196, %v1192
  %v1313 = vpack.c.b16 %v1201, %v1197
  %v1314 = vpack.c.b16 %v1202, %v1198
  %v1315 = vpack.c.b16 %v1203, %v1199
  %v1316 = vpack.c.b16 %v1204, %v1200
  %v1317 = vpack.c.b16 %v1209, %v1205
  %v1318 = vpack.c.b16 %v1210, %v1206
  %v1319 = vpack.c.b16 %v1211, %v1207
  %v1320 = vpack.c.b16 %v1212, %v1208
  %v1321 = vpack.c.b16 %v1217, %v1213
  %v1322 = vpack.c.b16 %v1218, %v1214
  %v1323 = vpack.c.b16 %v1219, %v1215
  %v1324 = vpack.c.b16 %v1220, %v1216
  %v1325 = vpack.c.b16 %v1225, %v1221
  %v1326 = vpack.c.b16 %v1226, %v1222
  %v1327 = vpack.c.b16 %v1227, %v1223
  %v1328 = vpack.c.b16 %v1228, %v1224
  %v1329 = vpack.c.b16 %v1233, %v1229
  %v1330 = vpack.c.b16 %v1234, %v1230
  %v1331 = vpack.c.b16 %v1235, %v1231
  %v1332 = vpack.c.b16 %v1236, %v1232
  %v1333 = vpack.c.b16 %v1241, %v1237
  %v1334 = vpack.c.b16 %v1242, %v1238
  %v1335 = vpack.c.b16 %v1243, %v1239
  %v1336 = vpack.c.b16 %v1244, %v1240
  %v1337 = vpack.c.b16 %v1249, %v1245
  %v1338 = vpack.c.b16 %v1250, %v1246
  %v1339 = vpack.c.b16 %v1251, %v1247
  %v1340 = vpack.c.b16 %v1252, %v1248
  %v1341 = vpack.c.b16 %v1257, %v1253
  %v1342 = vpack.c.b16 %v1258, %v1254
  %v1343 = vpack.c.b16 %v1259, %v1255
  %v1344 = vpack.c.b16 %v1260, %v1256
  %v1345 = vpack.c.b16 %v1265, %v1261
  %v1346 = vpack.c.b16 %v1266, %v1262
  %v1347 = vpack.c.b16 %v1267, %v1263
  %v1348 = vpack.c.b16 %v1268, %v1264
  %v1349 = vpack.c.b16 %v1273, %v1269
  %v1350 = vpack.c.b16 %v1274, %v1270
  %v1351 = vpack.c.b16 %v1275, %v1271
  %v1352 = vpack.c.b16 %v1276, %v1272
  %v1353 = vpack.c.b16 %v1281, %v1277
  %v1354 = vpack.c.b16 %v1282, %v1278
  %v1355 = vpack.c.b16 %v1283, %v1279
  %v1356 = vpack.c.b16 %v1284, %v1280
  %v1357 = vpack.c.b16 %v1289, %v1285
  %v1358 = vpack.c.b16 %v1290, %v1286
  %v1359 = vpack.c.b16 %v1291, %v1287
  %v1360 = vpack.c.b16 %v1292, %v1288
  %v1361 = vpack.c.b16 %v1297, %v1293
  %v1362 = vpack.c.b16 %v1298, %v1294
  %v1363 = vpack.c.b16 %v1299, %v1295
  %v1364 = vpack.c.b16 %v1300, %v1296
  %1429 = vmatprep.subr.bf16.mxu0 %v1302
  %1430 = vmatpush1.bf16.msra.mxu0 %v1301
  %1431 = vmatprep.subr.bf16.mxu0 %v1306
  %1432 = vmatpush1.bf16.msra.mxu0 %v1305
  %1433 = vmatprep.subr.bf16.mxu0 %v1310
  %1434 = vmatpush1.bf16.msra.mxu0 %v1309
  %1435 = vmatprep.subr.bf16.mxu0 %v1314
  %1436 = vmatpush1.bf16.msra.mxu0 %v1313
  %1437 = vmatprep.subr.bf16.mxu0 %v1318
  %1438 = vmatpush1.bf16.msra.mxu0 %v1317
  %1439 = vmatprep.subr.bf16.mxu0 %v1322
  %1440 = vmatpush1.bf16.msra.mxu0 %v1321
  %1441 = vmatprep.subr.bf16.mxu0 %v1326
  %1442 = vmatpush1.bf16.msra.mxu0 %v1325
  %1443 = vmatprep.subr.bf16.mxu0 %v1330
  %1444 = vmatpush1.bf16.msra.mxu0 %v1329
  %1445 = vmatprep.subr.bf16.mxu0 %v1334
  %1446 = vmatpush1.bf16.msra.mxu0 %v1333
  %1447 = vmatprep.subr.bf16.mxu0 %v1338
  %1448 = vmatpush1.bf16.msra.mxu0 %v1337
  %1449 = vmatprep.subr.bf16.mxu0 %v1342
  %1450 = vmatpush1.bf16.msra.mxu0 %v1341
  %1451 = vmatprep.subr.bf16.mxu0 %v1346
  %1452 = vmatpush1.bf16.msra.mxu0 %v1345
  %1453 = vmatprep.subr.bf16.mxu0 %v1350
  %1454 = vmatpush1.bf16.msra.mxu0 %v1349
  %1455 = vmatprep.subr.bf16.mxu0 %v1354
  %1456 = vmatpush1.bf16.msra.mxu0 %v1353
  %1457 = vmatprep.subr.bf16.mxu0 %v1358
  %1458 = vmatpush1.bf16.msra.mxu0 %v1357
  %1459 = vmatprep.subr.bf16.mxu0 %v1362
  %1460 = vmatpush1.bf16.msra.mxu0 %v1361
  %1461 = vmatprep.mubr.bf16.mxu0 %v1086
  %1462 = vmatmul.mubr.bf16.gmra.mrb[0].mxu0 %v1085
  %v1463 = vpop.f32.mrb[0].mxu0
  %v1464 = vadd.f32 %v1092, %v1463
  %v1465 = vpop.f32.mrb[0].mxu0
  %v1466 = vadd.f32 %v1096, %v1465
  %v1467 = vpop.f32.mrb[0].mxu0
  %v1468 = vadd.f32 %v1092, %v1467
  %v1469 = vpop.f32.mrb[0].mxu0
  %v1470 = vadd.f32 %v1096, %v1469
  %1471 = vdwg.mxu0
  %1472 = vmatprep.subr.bf16.mxu0 %v1304
  %1473 = vmatpush1.bf16.msra.mxu0 %v1303
  %1474 = vmatprep.subr.bf16.mxu0 %v1308
  %1475 = vmatpush1.bf16.msra.mxu0 %v1307
  %1476 = vmatprep.subr.bf16.mxu0 %v1312
  %1477 = vmatpush1.bf16.msra.mxu0 %v1311
  %1478 = vmatprep.subr.bf16.mxu0 %v1316
  %1479 = vmatpush1.bf16.msra.mxu0 %v1315
  %1480 = vmatprep.subr.bf16.mxu0 %v1320
  %1481 = vmatpush1.bf16.msra.mxu0 %v1319
  %1482 = vmatprep.subr.bf16.mxu0 %v1324
  %1483 = vmatpush1.bf16.msra.mxu0 %v1323
  %1484 = vmatprep.subr.bf16.mxu0 %v1328
  %1485 = vmatpush1.bf16.msra.mxu0 %v1327
  %1486 = vmatprep.subr.bf16.mxu0 %v1332
  %1487 = vmatpush1.bf16.msra.mxu0 %v1331
  %1488 = vmatprep.subr.bf16.mxu0 %v1336
  %1489 = vmatpush1.bf16.msra.mxu0 %v1335
  %1490 = vmatprep.subr.bf16.mxu0 %v1340
  %1491 = vmatpush1.bf16.msra.mxu0 %v1339
  %1492 = vmatprep.subr.bf16.mxu0 %v1344
  %1493 = vmatpush1.bf16.msra.mxu0 %v1343
  %1494 = vmatprep.subr.bf16.mxu0 %v1348
  %1495 = vmatpush1.bf16.msra.mxu0 %v1347
  %1496 = vmatprep.subr.bf16.mxu0 %v1352
  %1497 = vmatpush1.bf16.msra.mxu0 %v1351
  %1498 = vmatprep.subr.bf16.mxu0 %v1356
  %1499 = vmatpush1.bf16.msra.mxu0 %v1355
  %1500 = vmatprep.subr.bf16.mxu0 %v1360
  %1501 = vmatpush1.bf16.msra.mxu0 %v1359
  %1502 = vmatprep.subr.bf16.mxu0 %v1364
  %1503 = vmatpush1.bf16.msra.mxu0 %v1363
  %1504 = vmatprep.mubr.bf16.mxu0 %v1086
  %1505 = vmatmul.mubr.bf16.gmra.mrb[0].mxu0 %v1085
  %v1506 = vpop.f32.mrb[0].mxu0
  %v1507 = vadd.f32 %v1100, %v1506
  %v1508 = vpop.f32.mrb[0].mxu0
  %v1509 = vadd.f32 %v1104, %v1508
  %v1510 = vpop.f32.mrb[0].mxu0
  %v1511 = vadd.f32 %v1100, %v1510
  %v1512 = vpop.f32.mrb[0].mxu0
  %v1513 = vadd.f32 %v1104, %v1512
  %1514 = vdwg.mxu0
  %vm1515 = vcmp.gt.f32.partialorder %v1464, 0.0
  %vm1516 = vcmp.gt.f32.partialorder %v1466, 0.0
  %vm1517 = vcmp.gt.f32.partialorder %v1507, 0.0
  %vm1518 = vcmp.gt.f32.partialorder %v1509, 0.0
  %vm1519 = vcmp.gt.f32.partialorder %v1468, 0.0
  %vm1520 = vcmp.gt.f32.partialorder %v1470, 0.0
  %vm1521 = vcmp.gt.f32.partialorder %v1511, 0.0
  %vm1522 = vcmp.gt.f32.partialorder %v1513, 0.0
  %v1523 = vmul.f32 %v1464, 0.2
  %v1524 = vmul.f32 %v1466, 0.2
  %v1525 = vmul.f32 %v1507, 0.2
  %v1526 = vmul.f32 %v1509, 0.2
  %v1527 = vmul.f32 %v1468, 0.2
  %v1528 = vmul.f32 %v1470, 0.2
  %v1529 = vmul.f32 %v1511, 0.2
  %v1530 = vmul.f32 %v1513, 0.2
  %v1531 = vsel %vm1515, %v1464, %v1523
  %v1532 = vsel %vm1516, %v1466, %v1524
  %v1533 = vsel %vm1517, %v1507, %v1525
  %v1534 = vsel %vm1518, %v1509, %v1526
  %v1535 = vsel %vm1519, %v1468, %v1527
  %v1536 = vsel %vm1520, %v1470, %v1528
  %v1537 = vsel %vm1521, %v1511, %v1529
  %v1538 = vsel %vm1522, %v1513, %v1530
  %v1539 = vld [vmem:[%s13] sm:$0xf]
  %v1540 = vld [vmem:[%s13 + $0x4] sm:$0xf]
  %v1541 = vld [vmem:[%s13 + $0x8] sm:$0xf]
  %v1542 = vld [vmem:[%s13 + $0xc] sm:$0xf]
  %v1543 = vld [vmem:[%s13 + $0x10] sm:$0xf]
  %v1544 = vld [vmem:[%s13 + $0x14] sm:$0xf]
  %v1545 = vld [vmem:[%s13 + $0x18] sm:$0xf]
  %v1546 = vld [vmem:[%s13 + $0x1c] sm:$0xf]
  %v1547 = vld [vmem:[%s13 + $0x20] sm:$0xf]
  %v1548 = vld [vmem:[%s13 + $0x24] sm:$0xf]
  %v1549 = vld [vmem:[%s13 + $0x28] sm:$0xf]
  %v1550 = vld [vmem:[%s13 + $0x2c] sm:$0xf]
  %v1551 = vld [vmem:[%s13 + $0x30] sm:$0xf]
  %v1552 = vld [vmem:[%s13 + $0x34] sm:$0xf]
  %v1553 = vld [vmem:[%s13 + $0x38] sm:$0xf]
  %v1554 = vld [vmem:[%s13 + $0x3c] sm:$0xf]
  %v1555 = vld [vmem:[%s13 + $0x40] sm:$0xf]
  %v1556 = vld [vmem:[%s13 + $0x44] sm:$0xf]
  %v1557 = vld [vmem:[%s13 + $0x48] sm:$0xf]
  %v1558 = vld [vmem:[%s13 + $0x4c] sm:$0xf]
  %v1559 = vld [vmem:[%s13 + $0x50] sm:$0xf]
  %v1560 = vld [vmem:[%s13 + $0x54] sm:$0xf]
  %v1561 = vld [vmem:[%s13 + $0x58] sm:$0xf]
  %v1562 = vld [vmem:[%s13 + $0x5c] sm:$0xf]
  %v1563 = vld [vmem:[%s13 + $0x60] sm:$0xf]
  %v1564 = vld [vmem:[%s13 + $0x64] sm:$0xf]
  %v1565 = vld [vmem:[%s13 + $0x68] sm:$0xf]
  %v1566 = vld [vmem:[%s13 + $0x6c] sm:$0xf]
  %v1567 = vld [vmem:[%s13 + $0x70] sm:$0xf]
  %v1568 = vld [vmem:[%s13 + $0x74] sm:$0xf]
  %v1569 = vld [vmem:[%s13 + $0x78] sm:$0xf]
  %v1570 = vld [vmem:[%s13 + $0x7c] sm:$0xf]
  %v1571 = vld [vmem:[%s13 + $0x80] sm:$0xf]
  %v1572 = vld [vmem:[%s13 + $0x84] sm:$0xf]
  %v1573 = vld [vmem:[%s13 + $0x88] sm:$0xf]
  %v1574 = vld [vmem:[%s13 + $0x8c] sm:$0xf]
  %v1575 = vld [vmem:[%s13 + $0x90] sm:$0xf]
  %v1576 = vld [vmem:[%s13 + $0x94] sm:$0xf]
  %v1577 = vld [vmem:[%s13 + $0x98] sm:$0xf]
  %v1578 = vld [vmem:[%s13 + $0x9c] sm:$0xf]
  %v1579 = vld [vmem:[%s13 + $0xa0] sm:$0xf]
  %v1580 = vld [vmem:[%s13 + $0xa4] sm:$0xf]
  %v1581 = vld [vmem:[%s13 + $0xa8] sm:$0xf]
  %v1582 = vld [vmem:[%s13 + $0xac] sm:$0xf]
  %v1583 = vld [vmem:[%s13 + $0xb0] sm:$0xf]
  %v1584 = vld [vmem:[%s13 + $0xb4] sm:$0xf]
  %v1585 = vld [vmem:[%s13 + $0xb8] sm:$0xf]
  %v1586 = vld [vmem:[%s13 + $0xbc] sm:$0xf]
  %v1587 = vld [vmem:[%s13 + $0xc0] sm:$0xf]
  %v1588 = vld [vmem:[%s13 + $0xc4] sm:$0xf]
  %v1589 = vld [vmem:[%s13 + $0xc8] sm:$0xf]
  %v1590 = vld [vmem:[%s13 + $0xcc] sm:$0xf]
  %v1591 = vld [vmem:[%s13 + $0xd0] sm:$0xf]
  %v1592 = vld [vmem:[%s13 + $0xd4] sm:$0xf]
  %v1593 = vld [vmem:[%s13 + $0xd8] sm:$0xf]
  %v1594 = vld [vmem:[%s13 + $0xdc] sm:$0xf]
  %v1595 = vld [vmem:[%s13 + $0xe0] sm:$0xf]
  %v1596 = vld [vmem:[%s13 + $0xe4] sm:$0xf]
  %v1597 = vld [vmem:[%s13 + $0xe8] sm:$0xf]
  %v1598 = vld [vmem:[%s13 + $0xec] sm:$0xf]
  %v1599 = vld [vmem:[%s13 + $0xf0] sm:$0xf]
  %v1600 = vld [vmem:[%s13 + $0xf4] sm:$0xf]
  %v1601 = vld [vmem:[%s13 + $0xf8] sm:$0xf]
  %v1602 = vld [vmem:[%s13 + $0xfc] sm:$0xf]
  %v1603 = vpack.c.bf16 %v1535, %v1531
  %v1604 = vpack.c.bf16 %v1536, %v1532
  %v1605 = vpack.c.bf16 %v1537, %v1533
  %v1606 = vpack.c.bf16 %v1538, %v1534
  %v1607 = vld [vmem:[%s14] sm:$0x1]
  %v1609 = vlaneseq
  %v1610 = vshrl.u32 %v1609, 7
  %v1611 = vsub.s32 0, %v1610
  %v1612 = vrot.slane %v1607, %v1611
  %v1678 = vunpack.c.l.b16 %v1539
  %v1679 = vunpack.c.l.b16 %v1540
  %v1680 = vunpack.c.l.b16 %v1541
  %v1681 = vunpack.c.l.b16 %v1542
  %v1682 = vunpack.c.l.b16 %v1543
  %v1683 = vunpack.c.l.b16 %v1544
  %v1684 = vunpack.c.l.b16 %v1545
  %v1685 = vunpack.c.l.b16 %v1546
  %v1686 = vunpack.c.l.b16 %v1547
  %v1687 = vunpack.c.l.b16 %v1548
  %v1688 = vunpack.c.l.b16 %v1549
  %v1689 = vunpack.c.l.b16 %v1550
  %v1690 = vunpack.c.l.b16 %v1551
  %v1691 = vunpack.c.l.b16 %v1552
  %v1692 = vunpack.c.l.b16 %v1553
  %v1693 = vunpack.c.l.b16 %v1554
  %v1694 = vunpack.c.l.b16 %v1555
  %v1695 = vunpack.c.l.b16 %v1556
  %v1696 = vunpack.c.l.b16 %v1557
  %v1697 = vunpack.c.l.b16 %v1558
  %v1698 = vunpack.c.l.b16 %v1559
  %v1699 = vunpack.c.l.b16 %v1560
  %v1700 = vunpack.c.l.b16 %v1561
  %v1701 = vunpack.c.l.b16 %v1562
  %v1702 = vunpack.c.l.b16 %v1563
  %v1703 = vunpack.c.l.b16 %v1564
  %v1704 = vunpack.c.l.b16 %v1565
  %v1705 = vunpack.c.l.b16 %v1566
  %v1706 = vunpack.c.l.b16 %v1567
  %v1707 = vunpack.c.l.b16 %v1568
  %v1708 = vunpack.c.l.b16 %v1569
  %v1709 = vunpack.c.l.b16 %v1570
  %v1710 = vunpack.c.l.b16 %v1571
  %v1711 = vunpack.c.l.b16 %v1572
  %v1712 = vunpack.c.l.b16 %v1573
  %v1713 = vunpack.c.l.b16 %v1574
  %v1714 = vunpack.c.l.b16 %v1575
  %v1715 = vunpack.c.l.b16 %v1576
  %v1716 = vunpack.c.l.b16 %v1577
  %v1717 = vunpack.c.l.b16 %v1578
  %v1718 = vunpack.c.l.b16 %v1579
  %v1719 = vunpack.c.l.b16 %v1580
  %v1720 = vunpack.c.l.b16 %v1581
  %v1721 = vunpack.c.l.b16 %v1582
  %v1722 = vunpack.c.l.b16 %v1583
  %v1723 = vunpack.c.l.b16 %v1584
  %v1724 = vunpack.c.l.b16 %v1585
  %v1725 = vunpack.c.l.b16 %v1586
  %v1726 = vunpack.c.l.b16 %v1587
  %v1727 = vunpack.c.l.b16 %v1588
  %v1728 = vunpack.c.l.b16 %v1589
  %v1729 = vunpack.c.l.b16 %v1590
  %v1730 = vunpack.c.l.b16 %v1591
  %v1731 = vunpack.c.l.b16 %v1592
  %v1732 = vunpack.c.l.b16 %v1593
  %v1733 = vunpack.c.l.b16 %v1594
  %v1734 = vunpack.c.l.b16 %v1595
  %v1735 = vunpack.c.l.b16 %v1596
  %v1736 = vunpack.c.l.b16 %v1597
  %v1737 = vunpack.c.l.b16 %v1598
  %v1738 = vunpack.c.l.b16 %v1599
  %v1739 = vunpack.c.l.b16 %v1600
  %v1740 = vunpack.c.l.b16 %v1601
  %v1741 = vunpack.c.l.b16 %v1602
  %v1742 = vpack.c.b16 %v1679, %v1678
  %v1743 = vpack.c.b16 %v1681, %v1680
  %v1744 = vpack.c.b16 %v1683, %v1682
  %v1745 = vpack.c.b16 %v1685, %v1684
  %v1746 = vpack.c.b16 %v1687, %v1686
  %v1747 = vpack.c.b16 %v1689, %v1688
  %v1748 = vpack.c.b16 %v1691, %v1690
  %v1749 = vpack.c.b16 %v1693, %v1692
  %v1750 = vpack.c.b16 %v1695, %v1694
  %v1751 = vpack.c.b16 %v1697, %v1696
  %v1752 = vpack.c.b16 %v1699, %v1698
  %v1753 = vpack.c.b16 %v1701, %v1700
  %v1754 = vpack.c.b16 %v1703, %v1702
  %v1755 = vpack.c.b16 %v1705, %v1704
  %v1756 = vpack.c.b16 %v1707, %v1706
  %v1757 = vpack.c.b16 %v1709, %v1708
  %v1758 = vpack.c.b16 %v1711, %v1710
  %v1759 = vpack.c.b16 %v1713, %v1712
  %v1760 = vpack.c.b16 %v1715, %v1714
  %v1761 = vpack.c.b16 %v1717, %v1716
  %v1762 = vpack.c.b16 %v1719, %v1718
  %v1763 = vpack.c.b16 %v1721, %v1720
  %v1764 = vpack.c.b16 %v1723, %v1722
  %v1765 = vpack.c.b16 %v1725, %v1724
  %v1766 = vpack.c.b16 %v1727, %v1726
  %v1767 = vpack.c.b16 %v1729, %v1728
  %v1768 = vpack.c.b16 %v1731, %v1730
  %v1769 = vpack.c.b16 %v1733, %v1732
  %v1770 = vpack.c.b16 %v1735, %v1734
  %v1771 = vpack.c.b16 %v1737, %v1736
  %v1772 = vpack.c.b16 %v1739, %v1738
  %v1773 = vpack.c.b16 %v1741, %v1740
  %1806 = vmatprep.subr.bf16.mxu0 0
  %1807 = vmatpush1.bf16.msra.mxu0 %v1742
  %1808 = vmatprep.subr.bf16.mxu0 0
  %1809 = vmatpush1.bf16.msra.mxu0 %v1743
  %1810 = vmatprep.subr.bf16.mxu0 0
  %1811 = vmatpush1.bf16.msra.mxu0 %v1744
  %1812 = vmatprep.subr.bf16.mxu0 0
  %1813 = vmatpush1.bf16.msra.mxu0 %v1745
  %1814 = vmatprep.subr.bf16.mxu0 0
  %1815 = vmatpush1.bf16.msra.mxu0 %v1746
  %1816 = vmatprep.subr.bf16.mxu0 0
  %1817 = vmatpush1.bf16.msra.mxu0 %v1747
  %1818 = vmatprep.subr.bf16.mxu0 0
  %1819 = vmatpush1.bf16.msra.mxu0 %v1748
  %1820 = vmatprep.subr.bf16.mxu0 0
  %1821 = vmatpush1.bf16.msra.mxu0 %v1749
  %1822 = vmatprep.subr.bf16.mxu0 0
  %1823 = vmatpush1.bf16.msra.mxu0 %v1750
  %1824 = vmatprep.subr.bf16.mxu0 0
  %1825 = vmatpush1.bf16.msra.mxu0 %v1751
  %1826 = vmatprep.subr.bf16.mxu0 0
  %1827 = vmatpush1.bf16.msra.mxu0 %v1752
  %1828 = vmatprep.subr.bf16.mxu0 0
  %1829 = vmatpush1.bf16.msra.mxu0 %v1753
  %1830 = vmatprep.subr.bf16.mxu0 0
  %1831 = vmatpush1.bf16.msra.mxu0 %v1754
  %1832 = vmatprep.subr.bf16.mxu0 0
  %1833 = vmatpush1.bf16.msra.mxu0 %v1755
  %1834 = vmatprep.subr.bf16.mxu0 0
  %1835 = vmatpush1.bf16.msra.mxu0 %v1756
  %1836 = vmatprep.subr.bf16.mxu0 0
  %1837 = vmatpush1.bf16.msra.mxu0 %v1757
  %1838 = vmatprep.mubr.bf16.mxu0 %v1604
  %1839 = vmatmul.mubr.bf16.gmra.mrb[0].mxu0 %v1603
  %v1840 = vpop.f32.mrb[0].mxu0
  %v1841 = vadd.f32 %v1612, %v1840
  %v1842 = vpop.f32.mrb[0].mxu0
  %v1843 = vpop.f32.mrb[0].mxu0
  %v1844 = vadd.f32 %v1612, %v1843
  %v1845 = vpop.f32.mrb[0].mxu0
  %1846 = vdwg.mxu0
  %1847 = vmatprep.subr.bf16.mxu0 0
  %1848 = vmatpush1.bf16.msra.mxu0 %v1758
  %1849 = vmatprep.subr.bf16.mxu0 0
  %1850 = vmatpush1.bf16.msra.mxu0 %v1759
  %1851 = vmatprep.subr.bf16.mxu0 0
  %1852 = vmatpush1.bf16.msra.mxu0 %v1760
  %1853 = vmatprep.subr.bf16.mxu0 0
  %1854 = vmatpush1.bf16.msra.mxu0 %v1761
  %1855 = vmatprep.subr.bf16.mxu0 0
  %1856 = vmatpush1.bf16.msra.mxu0 %v1762
  %1857 = vmatprep.subr.bf16.mxu0 0
  %1858 = vmatpush1.bf16.msra.mxu0 %v1763
  %1859 = vmatprep.subr.bf16.mxu0 0
  %1860 = vmatpush1.bf16.msra.mxu0 %v1764
  %1861 = vmatprep.subr.bf16.mxu0 0
  %1862 = vmatpush1.bf16.msra.mxu0 %v1765
  %1863 = vmatprep.subr.bf16.mxu0 0
  %1864 = vmatpush1.bf16.msra.mxu0 %v1766
  %1865 = vmatprep.subr.bf16.mxu0 0
  %1866 = vmatpush1.bf16.msra.mxu0 %v1767
  %1867 = vmatprep.subr.bf16.mxu0 0
  %1868 = vmatpush1.bf16.msra.mxu0 %v1768
  %1869 = vmatprep.subr.bf16.mxu0 0
  %1870 = vmatpush1.bf16.msra.mxu0 %v1769
  %1871 = vmatprep.subr.bf16.mxu0 0
  %1872 = vmatpush1.bf16.msra.mxu0 %v1770
  %1873 = vmatprep.subr.bf16.mxu0 0
  %1874 = vmatpush1.bf16.msra.mxu0 %v1771
  %1875 = vmatprep.subr.bf16.mxu0 0
  %1876 = vmatpush1.bf16.msra.mxu0 %v1772
  %1877 = vmatprep.subr.bf16.mxu0 0
  %1878 = vmatpush1.bf16.msra.mxu0 %v1773
  %1879 = vmatprep.mubr.bf16.mxu0 %v1606
  %1880 = vmatmul.mubr.bf16.gmra.mrb[0].mxu0 %v1605
  %v1881 = vpop.f32.mrb[0].mxu0
  %v1882 = vadd.f32 %v1841, %v1881
  %v1883 = vpop.f32.mrb[0].mxu0
  %v1884 = vpop.f32.mrb[0].mxu0
  %v1885 = vadd.f32 %v1844, %v1884
  %v1886 = vpop.f32.mrb[0].mxu0
  %1887 = vdwg.mxu0
  %vm1888 = vcmp.gt.f32.partialorder %v1882, 0.0
  %vm1889 = vcmp.gt.f32.partialorder %v1885, 0.0
  %v1890 = vmul.f32 %v1882, 0.2
  %v1891 = vmul.f32 %v1885, 0.2
  %v1892 = vsel %vm1888, %v1882, %v1890
  %v1893 = vsel %vm1889, %v1885, %v1891
  %1894 = vst [vmem:[%s15] sm:$0xff] %v1892
  %1895 = vst [vmem:[%s15 + $0x8] sm:$0xff] %v1893
  // Predicated region
  $region62: #{autoencoder_forward.1} parent=0 // pred_check
    _
  $region63: #{autoencoder_forward.1} parent=0 // pred_check_branch
    %1897 = sbr.rel (0) target = $region65
  $region64: #{autoencoder_forward.1} parent=0 // pred_region
    _
  $region65: #{autoencoder_forward.1} parent=0 // pred_fallthru
    _
  // Predicated region
  $region66: #{autoencoder_forward.1} parent=0 // pred_check
    _
  $region67: #{autoencoder_forward.1} parent=0 // pred_check_branch
    %1899 = sbr.rel (0) target = $region69
  $region68: #{autoencoder_forward.1} parent=0 // pred_region
    _
  $region69: #{autoencoder_forward.1} parent=0 // pred_fallthru
    _

</llo_original>
